<compile_context>
chip_gen: v7x
topology: tpu7x:2x2x1
jax: 0.10.0
libtpu: 0.0.40
codegen_flags: <defaults>
</compile_context>

<pallas_src>
import functools

import numpy as np

import jax
import jax.numpy as jnp
from jax.experimental import pallas as pl
from jax.experimental.pallas import tpu as pltpu


def _round_up(x, m):
    return (x + m - 1) // m * m


def _unfold_kernel(p_ref, x_ref, o_ref, *, k, WT, split_data):
    # p_ref: (k*k, WT, bsz) bf16 one-hot scatter blocks (constant across the grid)
    # x_ref: (1, rows, k*WT)   rows index (c, bh); lanes index (kh, w, t)
    # o_ref: (1, k**3, rows, bsz)  with bsz = Wb*Tb and lanes ordered (bw, bt)
    for kh in range(k):
        # Static, aligned lane slice -> this kh's (rows, W*T) slab.
        a = x_ref[0, :, pl.ds(kh * WT, WT)]
        if split_data:
            # Exact 3-limb bf16 decomposition of the data operand; the 0/1 scatter
            # matrix is exact in bf16, so 3 DEFAULT-precision passes reproduce the
            # f32 values exactly (vs ~6 passes for Precision.HIGHEST).
            a0 = a.astype(jnp.bfloat16)
            r1 = a - a0.astype(jnp.float32)
            a1 = r1.astype(jnp.bfloat16)
            a2 = (r1 - a1.astype(jnp.float32)).astype(jnp.bfloat16)
            parts = (a0, a1, a2)
        else:
            parts = (a,)
        for j in range(k * k):              # j = kw*k + kt
            pj = p_ref[j]                   # (WT, bsz) bf16
            acc = jnp.dot(parts[0], pj, preferred_element_type=jnp.float32)
            for ap in parts[1:]:
                acc = acc + jnp.dot(ap, pj, preferred_element_type=jnp.float32)
            # The matmul result is stored directly (no lane re-slicing), and only
            # one result tile is live at a time.
            o_ref[0, kh * k * k + j, :, :] = acc.astype(o_ref.dtype)


def unfold_nd(x, kernel_size, stride=None):
    """Pallas equivalent of UnfoldNd(kernel_size)(x) for a (N, C, H, W, T) tensor.

    `stride` is accepted for API compatibility but, like the reference module,
    the effective stride is fixed to kernel_size (disjoint blocks).
    """
    del stride
    k = int(kernel_size)
    N, C, H, W, T = x.shape
    assert jnp.issubdtype(x.dtype, jnp.floating), "float inputs only"
    assert H % k == 0 and W % k == 0 and T % k == 0
    Hb, Wb, Tb = H // k, W // k, T // k
    WT = W * T
    bsz = Wb * Tb
    R = C * Hb                              # fused (c, bh) row axis
    L = R * bsz
    esz = x.dtype.itemsize
    split_data = x.dtype != jnp.bfloat16    # bf16 goes through the MXU untouched

    # Free (contiguous) reshape: rows r = c*Hb + bh, lanes q = kh*W*T + w*T + t.
    x3 = x.reshape(N, R, k * WT)

    # One-hot lane-scatter blocks (exact 0/1, stored in bf16), one per (kw, kt):
    #   P[kw*k+kt, w*T + t, bw*Tb + bt] = 1  iff  w == bw*k+kw and t == bt*k+kt
    col = np.arange(bsz)
    bw_, bt_ = col // Tb, col % Tb
    p_host = np.zeros((k * k, WT, bsz), np.float32)
    for kw in range(k):
        for kt in range(k):
            src = (bw_ * k + kw) * T + (bt_ * k + kt)
            p_host[kw * k + kt, src, col] = 1.0
    p_dev = jnp.asarray(p_host, dtype=jnp.bfloat16)   # exact; halves P's VMEM/DMA

    # --- per-chip VMEM budgeting --------------------------------------------
    try:
        vmem_cap = int(pltpu.get_tpu_info().vmem_capacity_bytes)
    except Exception:
        vmem_cap = 64 << 20                 # conservative (v7x per-core VMEM)
    budget = (vmem_cap * 7) // 10           # headroom for compiler scratch/spills

    lane_in = _round_up(k * WT, 128)
    lane_wt = _round_up(WT, 128)
    lane_out = _round_up(bsz, 128)
    p_bytes = (k * k) * _round_up(WT, 8) * lane_out * 2   # bf16, per buffer

    def step_bytes(rt):
        rows_p = _round_up(rt, 8)
        in_b = rows_p * lane_in * esz
        out_b = (k ** 3) * rows_p * lane_out * esz
        # In-kernel temporaries: the kh slab (native dtype), up to 3 bf16 limbs,
        # and one live f32 result tile (counted per review feedback).
        tmp_b = rows_p * lane_wt * (esz + (3 * 2 if split_data else 0)) \
              + rows_p * lane_out * 4
        return 2 * (in_b + out_b) + 2 * p_bytes + tmp_b

    # Largest row tile (multiple of 8, or the full extent) that fits the budget.
    cands = sorted({d for d in range(1, R + 1)
                    if R % d == 0 and (d % 8 == 0 or d == R)}, reverse=True)
    r_tile = cands[-1]                      # fallback: smallest valid tile
    for d in cands:
        if step_bytes(d) <= budget:
            r_tile = d
            break
    # Give the pipeline / megacore at least 4 parallel grid steps when possible.
    while N * (R // r_tile) < 4:
        smaller = [d for d in cands if d < r_tile]
        if not smaller:
            break
        r_tile = smaller[0]
    Rt = R // r_tile

    vmem_limit = int(min(max(step_bytes(r_tile) * 5 // 4 + (4 << 20), 32 << 20),
                         (vmem_cap * 9) // 10))

    kernel = functools.partial(_unfold_kernel, k=k, WT=WT, split_data=split_data)
    out4 = pl.pallas_call(
        kernel,
        out_shape=jax.ShapeDtypeStruct((N, k ** 3, R, bsz), x.dtype),
        grid_spec=pltpu.PrefetchScalarGridSpec(
            num_scalar_prefetch=0,
            grid=(N, Rt),
            in_specs=[
                # Constant scatter blocks: constant index_map, never re-fetched.
                pl.BlockSpec((k * k, WT, bsz), lambda n, ri: (0, 0, 0)),
                # One contiguous (r_tile, k*W*T) slab per step.
                pl.BlockSpec((1, r_tile, k * WT), lambda n, ri: (n, ri, 0)),
            ],
            out_specs=pl.BlockSpec((1, k ** 3, r_tile, bsz),
                                   lambda n, ri: (n, 0, ri, 0)),
        ),
        compiler_params=pltpu.CompilerParams(
            dimension_semantics=("parallel", "parallel"),
            vmem_limit_bytes=vmem_limit),
    )(p_dev, x3)

    # (k**3, C*Hb, Wb*Tb) row-major == (k**3, L): free reshape.
    return out4.reshape(N, k ** 3, L)


def unfold_ref(x, k):
    """Pure-JAX reference (matches the torch UnfoldNd semantics)."""
    N, C, H, W, T = x.shape
    Hb, Wb, Tb = H // k, W // k, T // k
    x8 = x.reshape(N, C, Hb, k, Wb, k, Tb, k)
    return jnp.transpose(x8, (0, 3, 5, 7, 1, 2, 4, 6)).reshape(N, k ** 3, -1)


if __name__ == "__main__":
    key = jax.random.PRNGKey(0)
    kernel_size = 2
    N, C, H, W, T = 2, 4, 16, 16, 16
    x = jax.random.normal(key, (N, C, H, W, T), dtype=jnp.float32)

    L = C * (H // kernel_size) * (W // kernel_size) * (T // kernel_size)

    # f32 path (data operand split into exact bf16 limbs inside the kernel).
    out = jax.block_until_ready(unfold_nd(x, kernel_size))
    ref = unfold_ref(x, kernel_size)
    assert out.shape == (N, kernel_size ** 3, L), out.shape
    assert out.dtype == x.dtype, out.dtype
    assert jnp.allclose(out, ref, atol=1e-6, rtol=1e-6), \
        float(jnp.max(jnp.abs(out - ref)))

    # bf16 path (single DEFAULT-precision pass; pure permutation => bit-exact).
    xb = x.astype(jnp.bfloat16)
    out_b = jax.block_until_ready(unfold_nd(xb, kernel_size))
    ref_b = unfold_ref(xb, kernel_size)
    assert out_b.dtype == jnp.bfloat16, out_b.dtype
    assert bool(jnp.array_equal(out_b, ref_b))

    print("KERNEL_OK")
</pallas_src>

<mosaic_0001>
module attributes {stable_mosaic.version = 11 : i64} {
  func.func @_unfold_kernel(%arg0: i32, %arg1: i32, %arg2: memref<4x256x64xbf16, #tpu.memory_space<vmem>>, %arg3: memref<1x16x512xf32, #tpu.memory_space<vmem>>, %arg4: memref<1x8x16x64xf32, #tpu.memory_space<vmem>>) attributes {dimension_semantics = [#tpu.dimension_semantics<parallel>, #tpu.dimension_semantics<parallel>], iteration_bounds = array<i64: 2, 2>, scalar_prefetch = 0 : i64, scratch_operands = 0 : i64, tpu.core_type = #tpu.core_type<tc>, window_params = [{pipeline_mode = #tpu.pipeline_mode<synchronous>, transform_indices = @transform_0, window_bounds = array<i64: 4, 256, 64>}, {transform_indices = @transform_1, window_bounds = array<i64: 1, 16, 512>}, {transform_indices = @transform_2, window_bounds = array<i64: 1, 8, 16, 64>}]} {
    %c0 = arith.constant 0 : index
    %c0_0 = arith.constant 0 : index
    %c0_1 = arith.constant 0 : index
    %0 = vector.load %arg3[%c0, %c0_0, %c0_1] : memref<1x16x512xf32, #tpu.memory_space<vmem>>, vector<1x16x256xf32>
    %1 = vector.shape_cast %0 : vector<1x16x256xf32> to vector<16x256xf32>
    %2 = arith.truncf %1 : vector<16x256xf32> to vector<16x256xbf16>
    %3 = arith.extf %2 : vector<16x256xbf16> to vector<16x256xf32>
    %4 = arith.subf %1, %3 : vector<16x256xf32>
    %5 = arith.truncf %4 : vector<16x256xf32> to vector<16x256xbf16>
    %6 = arith.extf %5 : vector<16x256xbf16> to vector<16x256xf32>
    %7 = arith.subf %4, %6 : vector<16x256xf32>
    %8 = arith.truncf %7 : vector<16x256xf32> to vector<16x256xbf16>
    %c0_2 = arith.constant 0 : index
    %c0_3 = arith.constant 0 : index
    %c0_4 = arith.constant 0 : index
    %9 = vector.load %arg2[%c0_2, %c0_3, %c0_4] : memref<4x256x64xbf16, #tpu.memory_space<vmem>>, vector<1x256x64xbf16>
    %10 = vector.shape_cast %9 : vector<1x256x64xbf16> to vector<256x64xbf16>
    %cst = arith.constant dense<0.000000e+00> : vector<16x64xf32>
    %11 = tpu.matmul %2, %10, %cst {dimension_numbers = #tpu.dot_dimension_numbers<[1], [0], [0], [1], [0, 0, 1, 1], [], []>} : vector<16x256xbf16>, vector<256x64xbf16>, vector<16x64xf32> -> vector<16x64xf32>
    %cst_5 = arith.constant dense<0.000000e+00> : vector<16x64xf32>
    %12 = tpu.matmul %5, %10, %cst_5 {dimension_numbers = #tpu.dot_dimension_numbers<[1], [0], [0], [1], [0, 0, 1, 1], [], []>} : vector<16x256xbf16>, vector<256x64xbf16>, vector<16x64xf32> -> vector<16x64xf32>
    %13 = arith.addf %11, %12 : vector<16x64xf32>
    %cst_6 = arith.constant dense<0.000000e+00> : vector<16x64xf32>
    %14 = tpu.matmul %8, %10, %cst_6 {dimension_numbers = #tpu.dot_dimension_numbers<[1], [0], [0], [1], [0, 0, 1, 1], [], []>} : vector<16x256xbf16>, vector<256x64xbf16>, vector<16x64xf32> -> vector<16x64xf32>
    %15 = arith.addf %13, %14 : vector<16x64xf32>
    %c0_7 = arith.constant 0 : index
    %c0_8 = arith.constant 0 : index
    %c0_9 = arith.constant 0 : index
    %c0_10 = arith.constant 0 : index
    %16 = vector.load %arg4[%c0_7, %c0_8, %c0_9, %c0_10] : memref<1x8x16x64xf32, #tpu.memory_space<vmem>>, vector<1x1x16x64xf32>
    %17 = vector.shape_cast %16 : vector<1x1x16x64xf32> to vector<16x64xf32>
    %18 = vector.shape_cast %15 : vector<16x64xf32> to vector<1x1x16x64xf32>
    tpu.vector_store %arg4[%c0_7, %c0_8, %c0_9, %c0_10], %18 {strides = array<i32>} : memref<1x8x16x64xf32, #tpu.memory_space<vmem>>, vector<1x1x16x64xf32>,
    %c1 = arith.constant 1 : index
    %c0_11 = arith.constant 0 : index
    %c0_12 = arith.constant 0 : index
    %19 = vector.load %arg2[%c1, %c0_11, %c0_12] : memref<4x256x64xbf16, #tpu.memory_space<vmem>>, vector<1x256x64xbf16>
    %20 = vector.shape_cast %19 : vector<1x256x64xbf16> to vector<256x64xbf16>
    %cst_13 = arith.constant dense<0.000000e+00> : vector<16x64xf32>
    %21 = tpu.matmul %2, %20, %cst_13 {dimension_numbers = #tpu.dot_dimension_numbers<[1], [0], [0], [1], [0, 0, 1, 1], [], []>} : vector<16x256xbf16>, vector<256x64xbf16>, vector<16x64xf32> -> vector<16x64xf32>
    %cst_14 = arith.constant dense<0.000000e+00> : vector<16x64xf32>
    %22 = tpu.matmul %5, %20, %cst_14 {dimension_numbers = #tpu.dot_dimension_numbers<[1], [0], [0], [1], [0, 0, 1, 1], [], []>} : vector<16x256xbf16>, vector<256x64xbf16>, vector<16x64xf32> -> vector<16x64xf32>
    %23 = arith.addf %21, %22 : vector<16x64xf32>
    %cst_15 = arith.constant dense<0.000000e+00> : vector<16x64xf32>
    %24 = tpu.matmul %8, %20, %cst_15 {dimension_numbers = #tpu.dot_dimension_numbers<[1], [0], [0], [1], [0, 0, 1, 1], [], []>} : vector<16x256xbf16>, vector<256x64xbf16>, vector<16x64xf32> -> vector<16x64xf32>
    %25 = arith.addf %23, %24 : vector<16x64xf32>
    %c0_16 = arith.constant 0 : index
    %c1_17 = arith.constant 1 : index
    %c0_18 = arith.constant 0 : index
    %c0_19 = arith.constant 0 : index
    %26 = vector.load %arg4[%c0_16, %c1_17, %c0_18, %c0_19] : memref<1x8x16x64xf32, #tpu.memory_space<vmem>>, vector<1x1x16x64xf32>
    %27 = vector.shape_cast %26 : vector<1x1x16x64xf32> to vector<16x64xf32>
    %28 = vector.shape_cast %25 : vector<16x64xf32> to vector<1x1x16x64xf32>
    tpu.vector_store %arg4[%c0_16, %c1_17, %c0_18, %c0_19], %28 {strides = array<i32>} : memref<1x8x16x64xf32, #tpu.memory_space<vmem>>, vector<1x1x16x64xf32>,
    %c2 = arith.constant 2 : index
    %c0_20 = arith.constant 0 : index
    %c0_21 = arith.constant 0 : index
    %29 = vector.load %arg2[%c2, %c0_20, %c0_21] : memref<4x256x64xbf16, #tpu.memory_space<vmem>>, vector<1x256x64xbf16>
    %30 = vector.shape_cast %29 : vector<1x256x64xbf16> to vector<256x64xbf16>
    %cst_22 = arith.constant dense<0.000000e+00> : vector<16x64xf32>
    %31 = tpu.matmul %2, %30, %cst_22 {dimension_numbers = #tpu.dot_dimension_numbers<[1], [0], [0], [1], [0, 0, 1, 1], [], []>} : vector<16x256xbf16>, vector<256x64xbf16>, vector<16x64xf32> -> vector<16x64xf32>
    %cst_23 = arith.constant dense<0.000000e+00> : vector<16x64xf32>
    %32 = tpu.matmul %5, %30, %cst_23 {dimension_numbers = #tpu.dot_dimension_numbers<[1], [0], [0], [1], [0, 0, 1, 1], [], []>} : vector<16x256xbf16>, vector<256x64xbf16>, vector<16x64xf32> -> vector<16x64xf32>
    %33 = arith.addf %31, %32 : vector<16x64xf32>
    %cst_24 = arith.constant dense<0.000000e+00> : vector<16x64xf32>
    %34 = tpu.matmul %8, %30, %cst_24 {dimension_numbers = #tpu.dot_dimension_numbers<[1], [0], [0], [1], [0, 0, 1, 1], [], []>} : vector<16x256xbf16>, vector<256x64xbf16>, vector<16x64xf32> -> vector<16x64xf32>
    %35 = arith.addf %33, %34 : vector<16x64xf32>
    %c0_25 = arith.constant 0 : index
    %c2_26 = arith.constant 2 : index
    %c0_27 = arith.constant 0 : index
    %c0_28 = arith.constant 0 : index
    %36 = vector.load %arg4[%c0_25, %c2_26, %c0_27, %c0_28] : memref<1x8x16x64xf32, #tpu.memory_space<vmem>>, vector<1x1x16x64xf32>
    %37 = vector.shape_cast %36 : vector<1x1x16x64xf32> to vector<16x64xf32>
    %38 = vector.shape_cast %35 : vector<16x64xf32> to vector<1x1x16x64xf32>
    tpu.vector_store %arg4[%c0_25, %c2_26, %c0_27, %c0_28], %38 {strides = array<i32>} : memref<1x8x16x64xf32, #tpu.memory_space<vmem>>, vector<1x1x16x64xf32>,
    %c3 = arith.constant 3 : index
    %c0_29 = arith.constant 0 : index
    %c0_30 = arith.constant 0 : index
    %39 = vector.load %arg2[%c3, %c0_29, %c0_30] : memref<4x256x64xbf16, #tpu.memory_space<vmem>>, vector<1x256x64xbf16>
    %40 = vector.shape_cast %39 : vector<1x256x64xbf16> to vector<256x64xbf16>
    %cst_31 = arith.constant dense<0.000000e+00> : vector<16x64xf32>
    %41 = tpu.matmul %2, %40, %cst_31 {dimension_numbers = #tpu.dot_dimension_numbers<[1], [0], [0], [1], [0, 0, 1, 1], [], []>} : vector<16x256xbf16>, vector<256x64xbf16>, vector<16x64xf32> -> vector<16x64xf32>
    %cst_32 = arith.constant dense<0.000000e+00> : vector<16x64xf32>
    %42 = tpu.matmul %5, %40, %cst_32 {dimension_numbers = #tpu.dot_dimension_numbers<[1], [0], [0], [1], [0, 0, 1, 1], [], []>} : vector<16x256xbf16>, vector<256x64xbf16>, vector<16x64xf32> -> vector<16x64xf32>
    %43 = arith.addf %41, %42 : vector<16x64xf32>
    %cst_33 = arith.constant dense<0.000000e+00> : vector<16x64xf32>
    %44 = tpu.matmul %8, %40, %cst_33 {dimension_numbers = #tpu.dot_dimension_numbers<[1], [0], [0], [1], [0, 0, 1, 1], [], []>} : vector<16x256xbf16>, vector<256x64xbf16>, vector<16x64xf32> -> vector<16x64xf32>
    %45 = arith.addf %43, %44 : vector<16x64xf32>
    %c0_34 = arith.constant 0 : index
    %c3_35 = arith.constant 3 : index
    %c0_36 = arith.constant 0 : index
    %c0_37 = arith.constant 0 : index
    %46 = vector.load %arg4[%c0_34, %c3_35, %c0_36, %c0_37] : memref<1x8x16x64xf32, #tpu.memory_space<vmem>>, vector<1x1x16x64xf32>
    %47 = vector.shape_cast %46 : vector<1x1x16x64xf32> to vector<16x64xf32>
    %48 = vector.shape_cast %45 : vector<16x64xf32> to vector<1x1x16x64xf32>
    tpu.vector_store %arg4[%c0_34, %c3_35, %c0_36, %c0_37], %48 {strides = array<i32>} : memref<1x8x16x64xf32, #tpu.memory_space<vmem>>, vector<1x1x16x64xf32>,
    %c0_38 = arith.constant 0 : index
    %c0_39 = arith.constant 0 : index
    %c256 = arith.constant 256 : index
    %49 = vector.load %arg3[%c0_38, %c0_39, %c256] : memref<1x16x512xf32, #tpu.memory_space<vmem>>, vector<1x16x256xf32>
    %50 = vector.shape_cast %49 : vector<1x16x256xf32> to vector<16x256xf32>
    %51 = arith.truncf %50 : vector<16x256xf32> to vector<16x256xbf16>
    %52 = arith.extf %51 : vector<16x256xbf16> to vector<16x256xf32>
    %53 = arith.subf %50, %52 : vector<16x256xf32>
    %54 = arith.truncf %53 : vector<16x256xf32> to vector<16x256xbf16>
    %55 = arith.extf %54 : vector<16x256xbf16> to vector<16x256xf32>
    %56 = arith.subf %53, %55 : vector<16x256xf32>
    %57 = arith.truncf %56 : vector<16x256xf32> to vector<16x256xbf16>
    %c0_40 = arith.constant 0 : index
    %c0_41 = arith.constant 0 : index
    %c0_42 = arith.constant 0 : index
    %58 = vector.load %arg2[%c0_40, %c0_41, %c0_42] : memref<4x256x64xbf16, #tpu.memory_space<vmem>>, vector<1x256x64xbf16>
    %59 = vector.shape_cast %58 : vector<1x256x64xbf16> to vector<256x64xbf16>
    %cst_43 = arith.constant dense<0.000000e+00> : vector<16x64xf32>
    %60 = tpu.matmul %51, %59, %cst_43 {dimension_numbers = #tpu.dot_dimension_numbers<[1], [0], [0], [1], [0, 0, 1, 1], [], []>} : vector<16x256xbf16>, vector<256x64xbf16>, vector<16x64xf32> -> vector<16x64xf32>
    %cst_44 = arith.constant dense<0.000000e+00> : vector<16x64xf32>
    %61 = tpu.matmul %54, %59, %cst_44 {dimension_numbers = #tpu.dot_dimension_numbers<[1], [0], [0], [1], [0, 0, 1, 1], [], []>} : vector<16x256xbf16>, vector<256x64xbf16>, vector<16x64xf32> -> vector<16x64xf32>
    %62 = arith.addf %60, %61 : vector<16x64xf32>
    %cst_45 = arith.constant dense<0.000000e+00> : vector<16x64xf32>
    %63 = tpu.matmul %57, %59, %cst_45 {dimension_numbers = #tpu.dot_dimension_numbers<[1], [0], [0], [1], [0, 0, 1, 1], [], []>} : vector<16x256xbf16>, vector<256x64xbf16>, vector<16x64xf32> -> vector<16x64xf32>
    %64 = arith.addf %62, %63 : vector<16x64xf32>
    %c0_46 = arith.constant 0 : index
    %c4 = arith.constant 4 : index
    %c0_47 = arith.constant 0 : index
    %c0_48 = arith.constant 0 : index
    %65 = vector.load %arg4[%c0_46, %c4, %c0_47, %c0_48] : memref<1x8x16x64xf32, #tpu.memory_space<vmem>>, vector<1x1x16x64xf32>
    %66 = vector.shape_cast %65 : vector<1x1x16x64xf32> to vector<16x64xf32>
    %67 = vector.shape_cast %64 : vector<16x64xf32> to vector<1x1x16x64xf32>
    tpu.vector_store %arg4[%c0_46, %c4, %c0_47, %c0_48], %67 {strides = array<i32>} : memref<1x8x16x64xf32, #tpu.memory_space<vmem>>, vector<1x1x16x64xf32>,
    %c1_49 = arith.constant 1 : index
    %c0_50 = arith.constant 0 : index
    %c0_51 = arith.constant 0 : index
    %68 = vector.load %arg2[%c1_49, %c0_50, %c0_51] : memref<4x256x64xbf16, #tpu.memory_space<vmem>>, vector<1x256x64xbf16>
    %69 = vector.shape_cast %68 : vector<1x256x64xbf16> to vector<256x64xbf16>
    %cst_52 = arith.constant dense<0.000000e+00> : vector<16x64xf32>
    %70 = tpu.matmul %51, %69, %cst_52 {dimension_numbers = #tpu.dot_dimension_numbers<[1], [0], [0], [1], [0, 0, 1, 1], [], []>} : vector<16x256xbf16>, vector<256x64xbf16>, vector<16x64xf32> -> vector<16x64xf32>
    %cst_53 = arith.constant dense<0.000000e+00> : vector<16x64xf32>
    %71 = tpu.matmul %54, %69, %cst_53 {dimension_numbers = #tpu.dot_dimension_numbers<[1], [0], [0], [1], [0, 0, 1, 1], [], []>} : vector<16x256xbf16>, vector<256x64xbf16>, vector<16x64xf32> -> vector<16x64xf32>
    %72 = arith.addf %70, %71 : vector<16x64xf32>
    %cst_54 = arith.constant dense<0.000000e+00> : vector<16x64xf32>
    %73 = tpu.matmul %57, %69, %cst_54 {dimension_numbers = #tpu.dot_dimension_numbers<[1], [0], [0], [1], [0, 0, 1, 1], [], []>} : vector<16x256xbf16>, vector<256x64xbf16>, vector<16x64xf32> -> vector<16x64xf32>
    %74 = arith.addf %72, %73 : vector<16x64xf32>
    %c0_55 = arith.constant 0 : index
    %c5 = arith.constant 5 : index
    %c0_56 = arith.constant 0 : index
    %c0_57 = arith.constant 0 : index
    %75 = vector.load %arg4[%c0_55, %c5, %c0_56, %c0_57] : memref<1x8x16x64xf32, #tpu.memory_space<vmem>>, vector<1x1x16x64xf32>
    %76 = vector.shape_cast %75 : vector<1x1x16x64xf32> to vector<16x64xf32>
    %77 = vector.shape_cast %74 : vector<16x64xf32> to vector<1x1x16x64xf32>
    tpu.vector_store %arg4[%c0_55, %c5, %c0_56, %c0_57], %77 {strides = array<i32>} : memref<1x8x16x64xf32, #tpu.memory_space<vmem>>, vector<1x1x16x64xf32>,
    %c2_58 = arith.constant 2 : index
    %c0_59 = arith.constant 0 : index
    %c0_60 = arith.constant 0 : index
    %78 = vector.load %arg2[%c2_58, %c0_59, %c0_60] : memref<4x256x64xbf16, #tpu.memory_space<vmem>>, vector<1x256x64xbf16>
    %79 = vector.shape_cast %78 : vector<1x256x64xbf16> to vector<256x64xbf16>
    %cst_61 = arith.constant dense<0.000000e+00> : vector<16x64xf32>
    %80 = tpu.matmul %51, %79, %cst_61 {dimension_numbers = #tpu.dot_dimension_numbers<[1], [0], [0], [1], [0, 0, 1, 1], [], []>} : vector<16x256xbf16>, vector<256x64xbf16>, vector<16x64xf32> -> vector<16x64xf32>
    %cst_62 = arith.constant dense<0.000000e+00> : vector<16x64xf32>
    %81 = tpu.matmul %54, %79, %cst_62 {dimension_numbers = #tpu.dot_dimension_numbers<[1], [0], [0], [1], [0, 0, 1, 1], [], []>} : vector<16x256xbf16>, vector<256x64xbf16>, vector<16x64xf32> -> vector<16x64xf32>
    %82 = arith.addf %80, %81 : vector<16x64xf32>
    %cst_63 = arith.constant dense<0.000000e+00> : vector<16x64xf32>
    %83 = tpu.matmul %57, %79, %cst_63 {dimension_numbers = #tpu.dot_dimension_numbers<[1], [0], [0], [1], [0, 0, 1, 1], [], []>} : vector<16x256xbf16>, vector<256x64xbf16>, vector<16x64xf32> -> vector<16x64xf32>
    %84 = arith.addf %82, %83 : vector<16x64xf32>
    %c0_64 = arith.constant 0 : index
    %c6 = arith.constant 6 : index
    %c0_65 = arith.constant 0 : index
    %c0_66 = arith.constant 0 : index
    %85 = vector.load %arg4[%c0_64, %c6, %c0_65, %c0_66] : memref<1x8x16x64xf32, #tpu.memory_space<vmem>>, vector<1x1x16x64xf32>
    %86 = vector.shape_cast %85 : vector<1x1x16x64xf32> to vector<16x64xf32>
    %87 = vector.shape_cast %84 : vector<16x64xf32> to vector<1x1x16x64xf32>
    tpu.vector_store %arg4[%c0_64, %c6, %c0_65, %c0_66], %87 {strides = array<i32>} : memref<1x8x16x64xf32, #tpu.memory_space<vmem>>, vector<1x1x16x64xf32>,
    %c3_67 = arith.constant 3 : index
    %c0_68 = arith.constant 0 : index
    %c0_69 = arith.constant 0 : index
    %88 = vector.load %arg2[%c3_67, %c0_68, %c0_69] : memref<4x256x64xbf16, #tpu.memory_space<vmem>>, vector<1x256x64xbf16>
    %89 = vector.shape_cast %88 : vector<1x256x64xbf16> to vector<256x64xbf16>
    %cst_70 = arith.constant dense<0.000000e+00> : vector<16x64xf32>
    %90 = tpu.matmul %51, %89, %cst_70 {dimension_numbers = #tpu.dot_dimension_numbers<[1], [0], [0], [1], [0, 0, 1, 1], [], []>} : vector<16x256xbf16>, vector<256x64xbf16>, vector<16x64xf32> -> vector<16x64xf32>
    %cst_71 = arith.constant dense<0.000000e+00> : vector<16x64xf32>
    %91 = tpu.matmul %54, %89, %cst_71 {dimension_numbers = #tpu.dot_dimension_numbers<[1], [0], [0], [1], [0, 0, 1, 1], [], []>} : vector<16x256xbf16>, vector<256x64xbf16>, vector<16x64xf32> -> vector<16x64xf32>
    %92 = arith.addf %90, %91 : vector<16x64xf32>
    %cst_72 = arith.constant dense<0.000000e+00> : vector<16x64xf32>
    %93 = tpu.matmul %57, %89, %cst_72 {dimension_numbers = #tpu.dot_dimension_numbers<[1], [0], [0], [1], [0, 0, 1, 1], [], []>} : vector<16x256xbf16>, vector<256x64xbf16>, vector<16x64xf32> -> vector<16x64xf32>
    %94 = arith.addf %92, %93 : vector<16x64xf32>
    %c0_73 = arith.constant 0 : index
    %c7 = arith.constant 7 : index
    %c0_74 = arith.constant 0 : index
    %c0_75 = arith.constant 0 : index
    %95 = vector.load %arg4[%c0_73, %c7, %c0_74, %c0_75] : memref<1x8x16x64xf32, #tpu.memory_space<vmem>>, vector<1x1x16x64xf32>
    %96 = vector.shape_cast %95 : vector<1x1x16x64xf32> to vector<16x64xf32>
    %97 = vector.shape_cast %94 : vector<16x64xf32> to vector<1x1x16x64xf32>
    tpu.vector_store %arg4[%c0_73, %c7, %c0_74, %c0_75], %97 {strides = array<i32>} : memref<1x8x16x64xf32, #tpu.memory_space<vmem>>, vector<1x1x16x64xf32>,
    return
  }
  func.func @transform_0(%arg0: i32, %arg1: i32) -> (i32, i32, i32) {
    %c0_i32 = arith.constant 0 : i32
    %c0_i32_0 = arith.constant 0 : i32
    %c0_i32_1 = arith.constant 0 : i32
    %c0_i32_2 = arith.constant 0 : i32
    return %c0_i32, %c0_i32_0, %c0_i32_1 : i32, i32, i32
  }
  func.func @transform_1(%arg0: i32, %arg1: i32) -> (i32, i32, i32) {
    %c0_i32 = arith.constant 0 : i32
    %c0_i32_0 = arith.constant 0 : i32
    return %arg0, %arg1, %c0_i32 : i32, i32, i32
  }
  func.func @transform_2(%arg0: i32, %arg1: i32) -> (i32, i32, i32, i32) {
    %c0_i32 = arith.constant 0 : i32
    %c0_i32_0 = arith.constant 0 : i32
    %c0_i32_1 = arith.constant 0 : i32
    return %arg0, %c0_i32, %arg1, %c0_i32_0 : i32, i32, i32, i32
  }
}

</mosaic_0001>

<llo_original>
// kernel: tpu_custom_call.1
$region0: #{tpu_custom_call.1}
  #allocation0 [shape = 'u32[]', space=smem, size = 0x4, offset = 0x4, fixed_abs, tag = 'smem constant byte address 0x4 - core index']
  #allocation1 [shape = 'u32[144,128]{1,0:T(1,128)}', space=vmem, size = 0x12000, scoped, tag = 'internal scratch']
  #allocation4 [shape = 's32[]', space=sflag, size = 0x4, offset = 0, fixed_abs, tag = 'sflag constant byte address 0x0 - dummy sync flag']
  %s0 = inlined_call_operand.vmem [shape: bf16[4,256,64], index: 0, kind: input, shape index: {}]
  %s1 = inlined_call_operand.vmem [shape: f32[2,32,512], index: 1, kind: input, shape index: {}]
  %s2 = inlined_call_operand.hbm [shape: f32[2,8,32,64], index: 2, kind: output, shape index: {}]
  %s3 = sld [smem:[#allocation0]]
  $region41: #{tpu_custom_call.1} parent=0
    _
  %s5 = ssub.s32 1, %s3
  %s6 = scalar_select 0, %s5, %s3
  $region1: #{tpu_custom_call.1} parent=0
    #allocation2 [shape = 'u8[131072]{0}', space=vmem, size = 0x20000, scoped, tag = 'output window, operand 0']
    #allocation3 [shape = 's32[2]{0}', space=sflag, size = 0x8, scoped, tag = 'scoped memory for tpu_custom_call.1']
    %7 = vsyncpa [#allocation3], 0
    %s8 = scalar_lea.sflag [#allocation3], 1
    %9 = vsyncpa %s8, 0
    loop: start=0, step=1, limit=6
    $region2: #{tpu_custom_call.1} parent=1 // loop_pre_header
      _
    $region3: #{tpu_custom_call.1} parent=1 // loop_header
      %s11 = sphi 0, %s15
      %p12 = scmp.ge.s32.totalorder %s11, 6
      %s18 = sphi 0, %s30
      %s19 = sphi 0, %s26
      %s20 = sphi 0, %s18
      %s21 = sphi 0, %s19
      %s22 = sphi 0, %s20
      %s23 = sphi 0, %s21
      %s31 = sphi 0, %s31
      %s33 = sphi 0, %s31
      %s34 = sphi 0, %s33
      %s48 = sphi 0, %s34
      %s56 = sphi 0, %s58
      %s59 = sphi 0, %s56
      %s60 = sphi 0, %s59
      %s76 = sphi 0, %s60
      %s84 = sphi 0, %s86
      %s87 = sphi 0, %s84
      %s88 = sphi 0, %s87
      %s104 = sphi 0, %s88
    $region4: #{tpu_custom_call.1} parent=1 // loop_header_branch
      %14 = sbr.rel (%p12) target = $region8
    $region5: #{tpu_custom_call.1} parent=1 // loop_body
      %s16 = ssub.s32 %s11, 1
      %s17 = ssub.s32 %s11, 2
      %s24 = sadd.s32 1, %s19
      %p25 = scmp.ge.s32.totalorder %s24, 2
      %s26 = scalar_select %p25, 0, %s24
      %s27 = sadd.s32 1, %s18
      %s28 = scalar_select %p25, %s27, %s18
      %p29 = scmp.ge.s32.totalorder %s28, 2
      %s30 = scalar_select %p29, 0, %s28
      %s32 = sadd.s32 %s31, 1
      %p35 = scmp.eq.s32.totalorder %s11, 3
      %p36 = scmp.ne.s32.totalorder %s31, %s33
      %p37 = scmp.eq.s32.totalorder %s11, 0
      %p38 = por %p36, %p37
      %p39 = scmp.ne.s32.totalorder %s31, %s33
      %p40 = scmp.eq.s32.totalorder %s16, 3
      %p41 = por %p39, %p40
      %p42 = scmp.ne.s32.totalorder %s33, %s34
      %p43 = scmp.eq.s32.totalorder %s16, 0
      %p44 = por %p42, %p43
      %p45 = scmp.ne.s32.totalorder %s33, %s34
      %p46 = scmp.eq.s32.totalorder %s17, 3
      %p47 = por %p45, %p46
      %p49 = scmp.ne.s32.totalorder %s34, %s48
      %p50 = scmp.eq.s32.totalorder %s17, 0
      %p51 = por %p49, %p50
      %s52 = ssub.s32 %s18, %s30
      %s53 = ssub.s32 %s19, %s26
      %s54 = sor.u32 %s52, %s53
      %p55 = scmp.eq.s32.totalorder %s54, 0
      %s57 = sadd.s32 %s56, 1
      %s58 = scalar_select %p55, %s56, %s57
      %p61 = pneg %p55
      %p62 = scmp.eq.s32.totalorder %s11, 3
      %p63 = por %p61, %p62
      %p64 = scmp.ne.s32.totalorder %s56, %s59
      %p65 = scmp.eq.s32.totalorder %s11, 0
      %p66 = por %p64, %p65
      %p67 = scmp.ne.s32.totalorder %s56, %s59
      %p68 = scmp.eq.s32.totalorder %s16, 3
      %p69 = por %p67, %p68
      %p70 = scmp.ne.s32.totalorder %s59, %s60
      %p71 = scmp.eq.s32.totalorder %s16, 0
      %p72 = por %p70, %p71
      %p73 = scmp.ne.s32.totalorder %s59, %s60
      %p74 = scmp.eq.s32.totalorder %s17, 3
      %p75 = por %p73, %p74
      %p77 = scmp.ne.s32.totalorder %s60, %s76
      %p78 = scmp.eq.s32.totalorder %s17, 0
      %p79 = por %p77, %p78
      %s80 = ssub.s32 %s18, %s30
      %s81 = ssub.s32 %s19, %s26
      %s82 = sor.u32 %s80, %s81
      %p83 = scmp.eq.s32.totalorder %s82, 0
      %s85 = sadd.s32 %s84, 1
      %s86 = scalar_select %p83, %s84, %s85
      %p89 = pneg %p83
      %p90 = scmp.eq.s32.totalorder %s11, 3
      %p91 = por %p89, %p90
      %p92 = scmp.ne.s32.totalorder %s84, %s87
      %p93 = scmp.eq.s32.totalorder %s11, 0
      %p94 = por %p92, %p93
      %p95 = scmp.ne.s32.totalorder %s84, %s87
      %p96 = scmp.eq.s32.totalorder %s16, 3
      %p97 = por %p95, %p96
      %p98 = scmp.ne.s32.totalorder %s87, %s88
      %p99 = scmp.eq.s32.totalorder %s16, 0
      %p100 = por %p98, %p99
      %p101 = scmp.ne.s32.totalorder %s87, %s88
      %p102 = scmp.eq.s32.totalorder %s17, 3
      %p103 = por %p101, %p102
      %p105 = scmp.ne.s32.totalorder %s88, %s104
      %p106 = scmp.eq.s32.totalorder %s17, 0
      %p107 = por %p105, %p106
      %p108 = scmp.le.s32.totalorder 1, %s11
      %p109 = scmp.lt.s32.totalorder %s11, 5
      %p110 = pnand %p108, %p109
      %p111 = pneg %p110
      // Predicated region
      $region9: #{tpu_custom_call.1} parent=5 // pred_check
        _
      $region10: #{tpu_custom_call.1} parent=5 // pred_check_branch
        %113 = sbr.rel (%p110) target = $region12
      $region11: #{tpu_custom_call.1} parent=5 // pred_region
        %s114 = ssub.s32 %s11, 1
        // Predicated region
        $region13: #{tpu_custom_call.1} parent=11 // pred_check
          %p115 = pneg %p44
        $region14: #{tpu_custom_call.1} parent=11 // pred_check_branch
          %117 = sbr.rel (%p115) target = $region16
        $region15: #{tpu_custom_call.1} parent=11 // pred_region
          _
        $region16: #{tpu_custom_call.1} parent=11 // pred_fallthru
          _
      $region12: #{tpu_custom_call.1} parent=5 // pred_fallthru
        _
      %p118 = scmp.lt.s32.totalorder %s11, 4
      // Predicated region
      $region17: #{tpu_custom_call.1} parent=5 // pred_check
        %p119 = pneg %p118
      $region18: #{tpu_custom_call.1} parent=5 // pred_check_branch
        %121 = sbr.rel (%p119) target = $region20
      $region19: #{tpu_custom_call.1} parent=5 // pred_region
        // Predicated region
        $region21: #{tpu_custom_call.1} parent=19 // pred_check
          %p122 = pneg %p66
        $region22: #{tpu_custom_call.1} parent=19 // pred_check_branch
          %124 = sbr.rel (%p122) target = $region24
        $region23: #{tpu_custom_call.1} parent=19 // pred_region
          %s125 = smul.u32 2, %s19
          %p126 = scmp.lt.s32.totalorder %s18, 1
          %s127 = scalar_select %p126, %s18, 1
          %p128 = scmp.lt.s32.totalorder %s125, 3
          %s129 = scalar_select %p128, %s125, 3
          %s130 = smul.addr %s129, 4
          %s131 = smul.addr %s127, 16
          %s132 = sadd.s32 %s130, %s131
          %s133 = smul.addr %s132, 8
          %s134 = scalar_lea.vmem %s1, %s133
          %s135 = smul.u32 2, %s19
        $region24: #{tpu_custom_call.1} parent=19 // pred_fallthru
          _
      $region20: #{tpu_custom_call.1} parent=5 // pred_fallthru
        _
      %p136 = scmp.le.s32.totalorder 1, %s11
      %p137 = scmp.lt.s32.totalorder %s11, 5
      %p138 = pnand %p136, %p137
      %p139 = pneg %p138
      // Predicated region
      $region25: #{tpu_custom_call.1} parent=5 // pred_check
        _
      $region26: #{tpu_custom_call.1} parent=5 // pred_check_branch
        %141 = sbr.rel (%p138) target = $region28
      $region27: #{tpu_custom_call.1} parent=5 // pred_region
        %s142 = ssub.s32 %s11, 1
        %p143 = pneg %p44
        %p144 = pneg %p41
        %s145 = smul.u32 2, %s21
        %p146 = scmp.lt.s32.totalorder %s20, 1
        %s147 = scalar_select %p146, %s20, 1
        %p148 = scmp.lt.s32.totalorder %s145, 3
        %s149 = scalar_select %p148, %s145, 3
        %s150 = smul.addr %s149, 4
        %s151 = smul.addr %s147, 16
        %s152 = sadd.s32 %s150, %s151
        %s153 = smul.addr %s152, 8
        %s154 = scalar_lea.vmem %s1, %s153
        %p155 = pneg %p72
        %p156 = pneg %p69
        %p157 = pneg %p100
        %p158 = pneg %p97
        %s159 = sand.u32 %s87, 1
        %s160 = scalar_lea.sflag [#allocation3], %s159
        %s161 = sand.u32 %s87, 1
        %s162 = smul.addr %s161, 128
        %s163 = scalar_lea.vmem [#allocation2], %s162
        %s164 = smul.u32 2, %s21
        %p165 = scmp.lt.s32.totalorder %s20, 1
        %s166 = scalar_select %p165, %s20, 1
        %p167 = scmp.lt.s32.totalorder %s164, 3
        %s168 = scalar_select %p167, %s164, 3
        %s169 = smul.addr %s168, 4
        %s170 = smul.addr %s166, 16
        %s171 = sadd.s32 %s169, %s170
        %s172 = smul.addr %s171, 8
        %s173 = scalar_lea.vmem %s1, %s172
        %s174 = smul.u32 2, %s21
        %s175 = smul.u32 2, %s21
        %v177 = vld [vmem:[%s173] sm:$0xff]
        %v178 = vld [vmem:[%s173 + $0x8] sm:$0xff]
        %v179 = vld [vmem:[%s173 + $0x20] sm:$0xff]
        %v180 = vld [vmem:[%s173 + $0x28] sm:$0xff]
        %v181 = vpack.c.bf16 %v179, %v177
        %v182 = vpack.c.bf16 %v180, %v178
        %v183 = vunpack.c.l.bf16 %v181
        %v184 = vunpack.c.l.bf16 %v182
        %v185 = vunpack.c.h.bf16 %v181
        %v186 = vunpack.c.h.bf16 %v182
        %v187 = vsub.f32 %v177, %v183
        %v188 = vsub.f32 %v178, %v184
        %v189 = vsub.f32 %v179, %v185
        %v190 = vsub.f32 %v180, %v186
        %v191 = vpack.c.bf16 %v189, %v187
        %v192 = vpack.c.bf16 %v190, %v188
        %v193 = vunpack.c.l.bf16 %v191
        %v194 = vunpack.c.l.bf16 %v192
        %v195 = vunpack.c.h.bf16 %v191
        %v196 = vunpack.c.h.bf16 %v192
        %v197 = vsub.f32 %v187, %v193
        %v198 = vsub.f32 %v188, %v194
        %v199 = vsub.f32 %v189, %v195
        %v200 = vsub.f32 %v190, %v196
        %v201 = vpack.c.bf16 %v199, %v197
        %v202 = vpack.c.bf16 %v200, %v198
        %v203 = vld [vmem:[%s0] sm:$0xf]
        %v204 = vld [vmem:[%s0 + $0x4] sm:$0xf]
        %v205 = vld [vmem:[%s0 + $0x8] sm:$0xf]
        %v206 = vld [vmem:[%s0 + $0xc] sm:$0xf]
        %v207 = vld [vmem:[%s0 + $0x10] sm:$0xf]
        %v208 = vld [vmem:[%s0 + $0x14] sm:$0xf]
        %v209 = vld [vmem:[%s0 + $0x18] sm:$0xf]
        %v210 = vld [vmem:[%s0 + $0x1c] sm:$0xf]
        %v211 = vld [vmem:[%s0 + $0x20] sm:$0xf]
        %v212 = vld [vmem:[%s0 + $0x24] sm:$0xf]
        %v213 = vld [vmem:[%s0 + $0x28] sm:$0xf]
        %v214 = vld [vmem:[%s0 + $0x2c] sm:$0xf]
        %v215 = vld [vmem:[%s0 + $0x30] sm:$0xf]
        %v216 = vld [vmem:[%s0 + $0x34] sm:$0xf]
        %v217 = vld [vmem:[%s0 + $0x38] sm:$0xf]
        %v218 = vld [vmem:[%s0 + $0x3c] sm:$0xf]
        %v219 = vld [vmem:[%s0 + $0x40] sm:$0xf]
        %v220 = vld [vmem:[%s0 + $0x44] sm:$0xf]
        %v221 = vld [vmem:[%s0 + $0x48] sm:$0xf]
        %v222 = vld [vmem:[%s0 + $0x4c] sm:$0xf]
        %v223 = vld [vmem:[%s0 + $0x50] sm:$0xf]
        %v224 = vld [vmem:[%s0 + $0x54] sm:$0xf]
        %v225 = vld [vmem:[%s0 + $0x58] sm:$0xf]
        %v226 = vld [vmem:[%s0 + $0x5c] sm:$0xf]
        %v227 = vld [vmem:[%s0 + $0x60] sm:$0xf]
        %v228 = vld [vmem:[%s0 + $0x64] sm:$0xf]
        %v229 = vld [vmem:[%s0 + $0x68] sm:$0xf]
        %v230 = vld [vmem:[%s0 + $0x6c] sm:$0xf]
        %v231 = vld [vmem:[%s0 + $0x70] sm:$0xf]
        %v232 = vld [vmem:[%s0 + $0x74] sm:$0xf]
        %v233 = vld [vmem:[%s0 + $0x78] sm:$0xf]
        %v234 = vld [vmem:[%s0 + $0x7c] sm:$0xf]
        %v267 = vunpack.c.l.b16 %v203
        %v268 = vunpack.c.l.b16 %v204
        %v269 = vunpack.c.l.b16 %v205
        %v270 = vunpack.c.l.b16 %v206
        %v271 = vunpack.c.l.b16 %v207
        %v272 = vunpack.c.l.b16 %v208
        %v273 = vunpack.c.l.b16 %v209
        %v274 = vunpack.c.l.b16 %v210
        %v275 = vunpack.c.l.b16 %v211
        %v276 = vunpack.c.l.b16 %v212
        %v277 = vunpack.c.l.b16 %v213
        %v278 = vunpack.c.l.b16 %v214
        %v279 = vunpack.c.l.b16 %v215
        %v280 = vunpack.c.l.b16 %v216
        %v281 = vunpack.c.l.b16 %v217
        %v282 = vunpack.c.l.b16 %v218
        %v283 = vunpack.c.l.b16 %v219
        %v284 = vunpack.c.l.b16 %v220
        %v285 = vunpack.c.l.b16 %v221
        %v286 = vunpack.c.l.b16 %v222
        %v287 = vunpack.c.l.b16 %v223
        %v288 = vunpack.c.l.b16 %v224
        %v289 = vunpack.c.l.b16 %v225
        %v290 = vunpack.c.l.b16 %v226
        %v291 = vunpack.c.l.b16 %v227
        %v292 = vunpack.c.l.b16 %v228
        %v293 = vunpack.c.l.b16 %v229
        %v294 = vunpack.c.l.b16 %v230
        %v295 = vunpack.c.l.b16 %v231
        %v296 = vunpack.c.l.b16 %v232
        %v297 = vunpack.c.l.b16 %v233
        %v298 = vunpack.c.l.b16 %v234
        %v299 = vpack.c.b16 %v268, %v267
        %v300 = vpack.c.b16 %v270, %v269
        %v301 = vpack.c.b16 %v272, %v271
        %v302 = vpack.c.b16 %v274, %v273
        %v303 = vpack.c.b16 %v276, %v275
        %v304 = vpack.c.b16 %v278, %v277
        %v305 = vpack.c.b16 %v280, %v279
        %v306 = vpack.c.b16 %v282, %v281
        %v307 = vpack.c.b16 %v284, %v283
        %v308 = vpack.c.b16 %v286, %v285
        %v309 = vpack.c.b16 %v288, %v287
        %v310 = vpack.c.b16 %v290, %v289
        %v311 = vpack.c.b16 %v292, %v291
        %v312 = vpack.c.b16 %v294, %v293
        %v313 = vpack.c.b16 %v296, %v295
        %v314 = vpack.c.b16 %v298, %v297
        %331 = vmatprep.subr.bf16.mxu0 0
        %332 = vmatpush1.bf16.msra.mxu0 %v299
        %333 = vmatprep.subr.bf16.mxu0 0
        %334 = vmatpush1.bf16.msra.mxu0 %v300
        %335 = vmatprep.subr.bf16.mxu0 0
        %336 = vmatpush1.bf16.msra.mxu0 %v301
        %337 = vmatprep.subr.bf16.mxu0 0
        %338 = vmatpush1.bf16.msra.mxu0 %v302
        %339 = vmatprep.subr.bf16.mxu0 0
        %340 = vmatpush1.bf16.msra.mxu0 %v303
        %341 = vmatprep.subr.bf16.mxu0 0
        %342 = vmatpush1.bf16.msra.mxu0 %v304
        %343 = vmatprep.subr.bf16.mxu0 0
        %344 = vmatpush1.bf16.msra.mxu0 %v305
        %345 = vmatprep.subr.bf16.mxu0 0
        %346 = vmatpush1.bf16.msra.mxu0 %v306
        %347 = vmatprep.subr.bf16.mxu0 0
        %348 = vmatpush1.bf16.msra.mxu0 %v307
        %349 = vmatprep.subr.bf16.mxu0 0
        %350 = vmatpush1.bf16.msra.mxu0 %v308
        %351 = vmatprep.subr.bf16.mxu0 0
        %352 = vmatpush1.bf16.msra.mxu0 %v309
        %353 = vmatprep.subr.bf16.mxu0 0
        %354 = vmatpush1.bf16.msra.mxu0 %v310
        %355 = vmatprep.subr.bf16.mxu0 0
        %356 = vmatpush1.bf16.msra.mxu0 %v311
        %357 = vmatprep.subr.bf16.mxu0 0
        %358 = vmatpush1.bf16.msra.mxu0 %v312
        %359 = vmatprep.subr.bf16.mxu0 0
        %360 = vmatpush1.bf16.msra.mxu0 %v313
        %361 = vmatprep.subr.bf16.mxu0 0
        %362 = vmatpush1.bf16.msra.mxu0 %v314
        %363 = vmatprep.mubr.bf16.mxu0 %v192
        %364 = vmatmul.mubr.bf16.gmra.mrb[0].mxu0 %v191
        %v365 = vpop.f32.mrb[0].mxu0
        %v366 = vadd.f32 0.0, %v365
        %v367 = vpop.f32.mrb[0].mxu0
        %v368 = vpop.f32.mrb[0].mxu0
        %v369 = vadd.f32 0.0, %v368
        %v370 = vpop.f32.mrb[0].mxu0
        %371 = vdwg.mxu0
        %372 = vmatprep.subr.bf16.mxu0 0
        %373 = vmatpush1.bf16.msra.mxu0 %v299
        %374 = vmatprep.subr.bf16.mxu0 0
        %375 = vmatpush1.bf16.msra.mxu0 %v300
        %376 = vmatprep.subr.bf16.mxu0 0
        %377 = vmatpush1.bf16.msra.mxu0 %v301
        %378 = vmatprep.subr.bf16.mxu0 0
        %379 = vmatpush1.bf16.msra.mxu0 %v302
        %380 = vmatprep.subr.bf16.mxu0 0
        %381 = vmatpush1.bf16.msra.mxu0 %v303
        %382 = vmatprep.subr.bf16.mxu0 0
        %383 = vmatpush1.bf16.msra.mxu0 %v304
        %384 = vmatprep.subr.bf16.mxu0 0
        %385 = vmatpush1.bf16.msra.mxu0 %v305
        %386 = vmatprep.subr.bf16.mxu0 0
        %387 = vmatpush1.bf16.msra.mxu0 %v306
        %388 = vmatprep.subr.bf16.mxu0 0
        %389 = vmatpush1.bf16.msra.mxu0 %v307
        %390 = vmatprep.subr.bf16.mxu0 0
        %391 = vmatpush1.bf16.msra.mxu0 %v308
        %392 = vmatprep.subr.bf16.mxu0 0
        %393 = vmatpush1.bf16.msra.mxu0 %v309
        %394 = vmatprep.subr.bf16.mxu0 0
        %395 = vmatpush1.bf16.msra.mxu0 %v310
        %396 = vmatprep.subr.bf16.mxu0 0
        %397 = vmatpush1.bf16.msra.mxu0 %v311
        %398 = vmatprep.subr.bf16.mxu0 0
        %399 = vmatpush1.bf16.msra.mxu0 %v312
        %400 = vmatprep.subr.bf16.mxu0 0
        %401 = vmatpush1.bf16.msra.mxu0 %v313
        %402 = vmatprep.subr.bf16.mxu0 0
        %403 = vmatpush1.bf16.msra.mxu0 %v314
        %404 = vmatprep.mubr.bf16.mxu0 %v182
        %405 = vmatmul.mubr.bf16.gmra.mrb[0].mxu0 %v181
        %v406 = vpop.f32.mrb[0].mxu0
        %v407 = vadd.f32 %v366, %v406
        %v408 = vpop.f32.mrb[0].mxu0
        %v409 = vpop.f32.mrb[0].mxu0
        %v410 = vadd.f32 %v369, %v409
        %v411 = vpop.f32.mrb[0].mxu0
        %412 = vdwg.mxu0
        %413 = vmatprep.subr.bf16.mxu0 0
        %414 = vmatpush1.bf16.msra.mxu0 %v299
        %415 = vmatprep.subr.bf16.mxu0 0
        %416 = vmatpush1.bf16.msra.mxu0 %v300
        %417 = vmatprep.subr.bf16.mxu0 0
        %418 = vmatpush1.bf16.msra.mxu0 %v301
        %419 = vmatprep.subr.bf16.mxu0 0
        %420 = vmatpush1.bf16.msra.mxu0 %v302
        %421 = vmatprep.subr.bf16.mxu0 0
        %422 = vmatpush1.bf16.msra.mxu0 %v303
        %423 = vmatprep.subr.bf16.mxu0 0
        %424 = vmatpush1.bf16.msra.mxu0 %v304
        %425 = vmatprep.subr.bf16.mxu0 0
        %426 = vmatpush1.bf16.msra.mxu0 %v305
        %427 = vmatprep.subr.bf16.mxu0 0
        %428 = vmatpush1.bf16.msra.mxu0 %v306
        %429 = vmatprep.subr.bf16.mxu0 0
        %430 = vmatpush1.bf16.msra.mxu0 %v307
        %431 = vmatprep.subr.bf16.mxu0 0
        %432 = vmatpush1.bf16.msra.mxu0 %v308
        %433 = vmatprep.subr.bf16.mxu0 0
        %434 = vmatpush1.bf16.msra.mxu0 %v309
        %435 = vmatprep.subr.bf16.mxu0 0
        %436 = vmatpush1.bf16.msra.mxu0 %v310
        %437 = vmatprep.subr.bf16.mxu0 0
        %438 = vmatpush1.bf16.msra.mxu0 %v311
        %439 = vmatprep.subr.bf16.mxu0 0
        %440 = vmatpush1.bf16.msra.mxu0 %v312
        %441 = vmatprep.subr.bf16.mxu0 0
        %442 = vmatpush1.bf16.msra.mxu0 %v313
        %443 = vmatprep.subr.bf16.mxu0 0
        %444 = vmatpush1.bf16.msra.mxu0 %v314
        %445 = vmatprep.mubr.bf16.mxu0 %v202
        %446 = vmatmul.mubr.bf16.gmra.mrb[0].mxu0 %v201
        %v447 = vpop.f32.mrb[0].mxu0
        %v448 = vadd.f32 0.0, %v447
        %v449 = vpop.f32.mrb[0].mxu0
        %v450 = vpop.f32.mrb[0].mxu0
        %v451 = vadd.f32 0.0, %v450
        %v452 = vpop.f32.mrb[0].mxu0
        %453 = vdwg.mxu0
        %v454 = vadd.f32 %v407, %v448
        %v455 = vadd.f32 %v410, %v451
        %vm456 = vcmask 523264
        %457 = vst.msk [vmem:[%s163] sm:$0xff] %vm456, %v454
        %458 = vst.msk [vmem:[%s163 + $0x8] sm:$0xff] %vm456, %v455
        %s459 = scalar_lea.vmem %s0, 128
        %v460 = vld [vmem:[%s459] sm:$0xf]
        %v461 = vld [vmem:[%s459 + $0x4] sm:$0xf]
        %v462 = vld [vmem:[%s459 + $0x8] sm:$0xf]
        %v463 = vld [vmem:[%s459 + $0xc] sm:$0xf]
        %v464 = vld [vmem:[%s459 + $0x10] sm:$0xf]
        %v465 = vld [vmem:[%s459 + $0x14] sm:$0xf]
        %v466 = vld [vmem:[%s459 + $0x18] sm:$0xf]
        %v467 = vld [vmem:[%s459 + $0x1c] sm:$0xf]
        %v468 = vld [vmem:[%s459 + $0x20] sm:$0xf]
        %v469 = vld [vmem:[%s459 + $0x24] sm:$0xf]
        %v470 = vld [vmem:[%s459 + $0x28] sm:$0xf]
        %v471 = vld [vmem:[%s459 + $0x2c] sm:$0xf]
        %v472 = vld [vmem:[%s459 + $0x30] sm:$0xf]
        %v473 = vld [vmem:[%s459 + $0x34] sm:$0xf]
        %v474 = vld [vmem:[%s459 + $0x38] sm:$0xf]
        %v475 = vld [vmem:[%s459 + $0x3c] sm:$0xf]
        %v476 = vld [vmem:[%s459 + $0x40] sm:$0xf]
        %v477 = vld [vmem:[%s459 + $0x44] sm:$0xf]
        %v478 = vld [vmem:[%s459 + $0x48] sm:$0xf]
        %v479 = vld [vmem:[%s459 + $0x4c] sm:$0xf]
        %v480 = vld [vmem:[%s459 + $0x50] sm:$0xf]
        %v481 = vld [vmem:[%s459 + $0x54] sm:$0xf]
        %v482 = vld [vmem:[%s459 + $0x58] sm:$0xf]
        %v483 = vld [vmem:[%s459 + $0x5c] sm:$0xf]
        %v484 = vld [vmem:[%s459 + $0x60] sm:$0xf]
        %v485 = vld [vmem:[%s459 + $0x64] sm:$0xf]
        %v486 = vld [vmem:[%s459 + $0x68] sm:$0xf]
        %v487 = vld [vmem:[%s459 + $0x6c] sm:$0xf]
        %v488 = vld [vmem:[%s459 + $0x70] sm:$0xf]
        %v489 = vld [vmem:[%s459 + $0x74] sm:$0xf]
        %v490 = vld [vmem:[%s459 + $0x78] sm:$0xf]
        %v491 = vld [vmem:[%s459 + $0x7c] sm:$0xf]
        %v524 = vunpack.c.l.b16 %v460
        %v525 = vunpack.c.l.b16 %v461
        %v526 = vunpack.c.l.b16 %v462
        %v527 = vunpack.c.l.b16 %v463
        %v528 = vunpack.c.l.b16 %v464
        %v529 = vunpack.c.l.b16 %v465
        %v530 = vunpack.c.l.b16 %v466
        %v531 = vunpack.c.l.b16 %v467
        %v532 = vunpack.c.l.b16 %v468
        %v533 = vunpack.c.l.b16 %v469
        %v534 = vunpack.c.l.b16 %v470
        %v535 = vunpack.c.l.b16 %v471
        %v536 = vunpack.c.l.b16 %v472
        %v537 = vunpack.c.l.b16 %v473
        %v538 = vunpack.c.l.b16 %v474
        %v539 = vunpack.c.l.b16 %v475
        %v540 = vunpack.c.l.b16 %v476
        %v541 = vunpack.c.l.b16 %v477
        %v542 = vunpack.c.l.b16 %v478
        %v543 = vunpack.c.l.b16 %v479
        %v544 = vunpack.c.l.b16 %v480
        %v545 = vunpack.c.l.b16 %v481
        %v546 = vunpack.c.l.b16 %v482
        %v547 = vunpack.c.l.b16 %v483
        %v548 = vunpack.c.l.b16 %v484
        %v549 = vunpack.c.l.b16 %v485
        %v550 = vunpack.c.l.b16 %v486
        %v551 = vunpack.c.l.b16 %v487
        %v552 = vunpack.c.l.b16 %v488
        %v553 = vunpack.c.l.b16 %v489
        %v554 = vunpack.c.l.b16 %v490
        %v555 = vunpack.c.l.b16 %v491
        %v556 = vpack.c.b16 %v525, %v524
        %v557 = vpack.c.b16 %v527, %v526
        %v558 = vpack.c.b16 %v529, %v528
        %v559 = vpack.c.b16 %v531, %v530
        %v560 = vpack.c.b16 %v533, %v532
        %v561 = vpack.c.b16 %v535, %v534
        %v562 = vpack.c.b16 %v537, %v536
        %v563 = vpack.c.b16 %v539, %v538
        %v564 = vpack.c.b16 %v541, %v540
        %v565 = vpack.c.b16 %v543, %v542
        %v566 = vpack.c.b16 %v545, %v544
        %v567 = vpack.c.b16 %v547, %v546
        %v568 = vpack.c.b16 %v549, %v548
        %v569 = vpack.c.b16 %v551, %v550
        %v570 = vpack.c.b16 %v553, %v552
        %v571 = vpack.c.b16 %v555, %v554
        %588 = vmatprep.subr.bf16.mxu0 0
        %589 = vmatpush1.bf16.msra.mxu0 %v556
        %590 = vmatprep.subr.bf16.mxu0 0
        %591 = vmatpush1.bf16.msra.mxu0 %v557
        %592 = vmatprep.subr.bf16.mxu0 0
        %593 = vmatpush1.bf16.msra.mxu0 %v558
        %594 = vmatprep.subr.bf16.mxu0 0
        %595 = vmatpush1.bf16.msra.mxu0 %v559
        %596 = vmatprep.subr.bf16.mxu0 0
        %597 = vmatpush1.bf16.msra.mxu0 %v560
        %598 = vmatprep.subr.bf16.mxu0 0
        %599 = vmatpush1.bf16.msra.mxu0 %v561
        %600 = vmatprep.subr.bf16.mxu0 0
        %601 = vmatpush1.bf16.msra.mxu0 %v562
        %602 = vmatprep.subr.bf16.mxu0 0
        %603 = vmatpush1.bf16.msra.mxu0 %v563
        %604 = vmatprep.subr.bf16.mxu0 0
        %605 = vmatpush1.bf16.msra.mxu0 %v564
        %606 = vmatprep.subr.bf16.mxu0 0
        %607 = vmatpush1.bf16.msra.mxu0 %v565
        %608 = vmatprep.subr.bf16.mxu0 0
        %609 = vmatpush1.bf16.msra.mxu0 %v566
        %610 = vmatprep.subr.bf16.mxu0 0
        %611 = vmatpush1.bf16.msra.mxu0 %v567
        %612 = vmatprep.subr.bf16.mxu0 0
        %613 = vmatpush1.bf16.msra.mxu0 %v568
        %614 = vmatprep.subr.bf16.mxu0 0
        %615 = vmatpush1.bf16.msra.mxu0 %v569
        %616 = vmatprep.subr.bf16.mxu0 0
        %617 = vmatpush1.bf16.msra.mxu0 %v570
        %618 = vmatprep.subr.bf16.mxu0 0
        %619 = vmatpush1.bf16.msra.mxu0 %v571
        %620 = vmatprep.mubr.bf16.mxu0 %v192
        %621 = vmatmul.mubr.bf16.gmra.mrb[0].mxu0 %v191
        %v622 = vpop.f32.mrb[0].mxu0
        %v623 = vadd.f32 0.0, %v622
        %v624 = vpop.f32.mrb[0].mxu0
        %v625 = vpop.f32.mrb[0].mxu0
        %v626 = vadd.f32 0.0, %v625
        %v627 = vpop.f32.mrb[0].mxu0
        %628 = vdwg.mxu0
        %629 = vmatprep.subr.bf16.mxu0 0
        %630 = vmatpush1.bf16.msra.mxu0 %v556
        %631 = vmatprep.subr.bf16.mxu0 0
        %632 = vmatpush1.bf16.msra.mxu0 %v557
        %633 = vmatprep.subr.bf16.mxu0 0
        %634 = vmatpush1.bf16.msra.mxu0 %v558
        %635 = vmatprep.subr.bf16.mxu0 0
        %636 = vmatpush1.bf16.msra.mxu0 %v559
        %637 = vmatprep.subr.bf16.mxu0 0
        %638 = vmatpush1.bf16.msra.mxu0 %v560
        %639 = vmatprep.subr.bf16.mxu0 0
        %640 = vmatpush1.bf16.msra.mxu0 %v561
        %641 = vmatprep.subr.bf16.mxu0 0
        %642 = vmatpush1.bf16.msra.mxu0 %v562
        %643 = vmatprep.subr.bf16.mxu0 0
        %644 = vmatpush1.bf16.msra.mxu0 %v563
        %645 = vmatprep.subr.bf16.mxu0 0
        %646 = vmatpush1.bf16.msra.mxu0 %v564
        %647 = vmatprep.subr.bf16.mxu0 0
        %648 = vmatpush1.bf16.msra.mxu0 %v565
        %649 = vmatprep.subr.bf16.mxu0 0
        %650 = vmatpush1.bf16.msra.mxu0 %v566
        %651 = vmatprep.subr.bf16.mxu0 0
        %652 = vmatpush1.bf16.msra.mxu0 %v567
        %653 = vmatprep.subr.bf16.mxu0 0
        %654 = vmatpush1.bf16.msra.mxu0 %v568
        %655 = vmatprep.subr.bf16.mxu0 0
        %656 = vmatpush1.bf16.msra.mxu0 %v569
        %657 = vmatprep.subr.bf16.mxu0 0
        %658 = vmatpush1.bf16.msra.mxu0 %v570
        %659 = vmatprep.subr.bf16.mxu0 0
        %660 = vmatpush1.bf16.msra.mxu0 %v571
        %661 = vmatprep.mubr.bf16.mxu0 %v182
        %662 = vmatmul.mubr.bf16.gmra.mrb[0].mxu0 %v181
        %v663 = vpop.f32.mrb[0].mxu0
        %v664 = vadd.f32 %v623, %v663
        %v665 = vpop.f32.mrb[0].mxu0
        %v666 = vpop.f32.mrb[0].mxu0
        %v667 = vadd.f32 %v626, %v666
        %v668 = vpop.f32.mrb[0].mxu0
        %669 = vdwg.mxu0
        %670 = vmatprep.subr.bf16.mxu0 0
        %671 = vmatpush1.bf16.msra.mxu0 %v556
        %672 = vmatprep.subr.bf16.mxu0 0
        %673 = vmatpush1.bf16.msra.mxu0 %v557
        %674 = vmatprep.subr.bf16.mxu0 0
        %675 = vmatpush1.bf16.msra.mxu0 %v558
        %676 = vmatprep.subr.bf16.mxu0 0
        %677 = vmatpush1.bf16.msra.mxu0 %v559
        %678 = vmatprep.subr.bf16.mxu0 0
        %679 = vmatpush1.bf16.msra.mxu0 %v560
        %680 = vmatprep.subr.bf16.mxu0 0
        %681 = vmatpush1.bf16.msra.mxu0 %v561
        %682 = vmatprep.subr.bf16.mxu0 0
        %683 = vmatpush1.bf16.msra.mxu0 %v562
        %684 = vmatprep.subr.bf16.mxu0 0
        %685 = vmatpush1.bf16.msra.mxu0 %v563
        %686 = vmatprep.subr.bf16.mxu0 0
        %687 = vmatpush1.bf16.msra.mxu0 %v564
        %688 = vmatprep.subr.bf16.mxu0 0
        %689 = vmatpush1.bf16.msra.mxu0 %v565
        %690 = vmatprep.subr.bf16.mxu0 0
        %691 = vmatpush1.bf16.msra.mxu0 %v566
        %692 = vmatprep.subr.bf16.mxu0 0
        %693 = vmatpush1.bf16.msra.mxu0 %v567
        %694 = vmatprep.subr.bf16.mxu0 0
        %695 = vmatpush1.bf16.msra.mxu0 %v568
        %696 = vmatprep.subr.bf16.mxu0 0
        %697 = vmatpush1.bf16.msra.mxu0 %v569
        %698 = vmatprep.subr.bf16.mxu0 0
        %699 = vmatpush1.bf16.msra.mxu0 %v570
        %700 = vmatprep.subr.bf16.mxu0 0
        %701 = vmatpush1.bf16.msra.mxu0 %v571
        %702 = vmatprep.mubr.bf16.mxu0 %v202
        %703 = vmatmul.mubr.bf16.gmra.mrb[0].mxu0 %v201
        %v704 = vpop.f32.mrb[0].mxu0
        %v705 = vadd.f32 0.0, %v704
        %v706 = vpop.f32.mrb[0].mxu0
        %v707 = vpop.f32.mrb[0].mxu0
        %v708 = vadd.f32 0.0, %v707
        %v709 = vpop.f32.mrb[0].mxu0
        %710 = vdwg.mxu0
        %v711 = vadd.f32 %v664, %v705
        %v712 = vadd.f32 %v667, %v708
        %s713 = scalar_lea.vmem %s163, 16 [#allocation2]
        %714 = vst.msk [vmem:[%s713] sm:$0xff] %vm456, %v711
        %715 = vst.msk [vmem:[%s713 + $0x8] sm:$0xff] %vm456, %v712
        %s716 = scalar_lea.vmem %s0, 256
        %v717 = vld [vmem:[%s716] sm:$0xf]
        %v718 = vld [vmem:[%s716 + $0x4] sm:$0xf]
        %v719 = vld [vmem:[%s716 + $0x8] sm:$0xf]
        %v720 = vld [vmem:[%s716 + $0xc] sm:$0xf]
        %v721 = vld [vmem:[%s716 + $0x10] sm:$0xf]
        %v722 = vld [vmem:[%s716 + $0x14] sm:$0xf]
        %v723 = vld [vmem:[%s716 + $0x18] sm:$0xf]
        %v724 = vld [vmem:[%s716 + $0x1c] sm:$0xf]
        %v725 = vld [vmem:[%s716 + $0x20] sm:$0xf]
        %v726 = vld [vmem:[%s716 + $0x24] sm:$0xf]
        %v727 = vld [vmem:[%s716 + $0x28] sm:$0xf]
        %v728 = vld [vmem:[%s716 + $0x2c] sm:$0xf]
        %v729 = vld [vmem:[%s716 + $0x30] sm:$0xf]
        %v730 = vld [vmem:[%s716 + $0x34] sm:$0xf]
        %v731 = vld [vmem:[%s716 + $0x38] sm:$0xf]
        %v732 = vld [vmem:[%s716 + $0x3c] sm:$0xf]
        %v733 = vld [vmem:[%s716 + $0x40] sm:$0xf]
        %v734 = vld [vmem:[%s716 + $0x44] sm:$0xf]
        %v735 = vld [vmem:[%s716 + $0x48] sm:$0xf]
        %v736 = vld [vmem:[%s716 + $0x4c] sm:$0xf]
        %v737 = vld [vmem:[%s716 + $0x50] sm:$0xf]
        %v738 = vld [vmem:[%s716 + $0x54] sm:$0xf]
        %v739 = vld [vmem:[%s716 + $0x58] sm:$0xf]
        %v740 = vld [vmem:[%s716 + $0x5c] sm:$0xf]
        %v741 = vld [vmem:[%s716 + $0x60] sm:$0xf]
        %v742 = vld [vmem:[%s716 + $0x64] sm:$0xf]
        %v743 = vld [vmem:[%s716 + $0x68] sm:$0xf]
        %v744 = vld [vmem:[%s716 + $0x6c] sm:$0xf]
        %v745 = vld [vmem:[%s716 + $0x70] sm:$0xf]
        %v746 = vld [vmem:[%s716 + $0x74] sm:$0xf]
        %v747 = vld [vmem:[%s716 + $0x78] sm:$0xf]
        %v748 = vld [vmem:[%s716 + $0x7c] sm:$0xf]
        %v781 = vunpack.c.l.b16 %v717
        %v782 = vunpack.c.l.b16 %v718
        %v783 = vunpack.c.l.b16 %v719
        %v784 = vunpack.c.l.b16 %v720
        %v785 = vunpack.c.l.b16 %v721
        %v786 = vunpack.c.l.b16 %v722
        %v787 = vunpack.c.l.b16 %v723
        %v788 = vunpack.c.l.b16 %v724
        %v789 = vunpack.c.l.b16 %v725
        %v790 = vunpack.c.l.b16 %v726
        %v791 = vunpack.c.l.b16 %v727
        %v792 = vunpack.c.l.b16 %v728
        %v793 = vunpack.c.l.b16 %v729
        %v794 = vunpack.c.l.b16 %v730
        %v795 = vunpack.c.l.b16 %v731
        %v796 = vunpack.c.l.b16 %v732
        %v797 = vunpack.c.l.b16 %v733
        %v798 = vunpack.c.l.b16 %v734
        %v799 = vunpack.c.l.b16 %v735
        %v800 = vunpack.c.l.b16 %v736
        %v801 = vunpack.c.l.b16 %v737
        %v802 = vunpack.c.l.b16 %v738
        %v803 = vunpack.c.l.b16 %v739
        %v804 = vunpack.c.l.b16 %v740
        %v805 = vunpack.c.l.b16 %v741
        %v806 = vunpack.c.l.b16 %v742
        %v807 = vunpack.c.l.b16 %v743
        %v808 = vunpack.c.l.b16 %v744
        %v809 = vunpack.c.l.b16 %v745
        %v810 = vunpack.c.l.b16 %v746
        %v811 = vunpack.c.l.b16 %v747
        %v812 = vunpack.c.l.b16 %v748
        %v813 = vpack.c.b16 %v782, %v781
        %v814 = vpack.c.b16 %v784, %v783
        %v815 = vpack.c.b16 %v786, %v785
        %v816 = vpack.c.b16 %v788, %v787
        %v817 = vpack.c.b16 %v790, %v789
        %v818 = vpack.c.b16 %v792, %v791
        %v819 = vpack.c.b16 %v794, %v793
        %v820 = vpack.c.b16 %v796, %v795
        %v821 = vpack.c.b16 %v798, %v797
        %v822 = vpack.c.b16 %v800, %v799
        %v823 = vpack.c.b16 %v802, %v801
        %v824 = vpack.c.b16 %v804, %v803
        %v825 = vpack.c.b16 %v806, %v805
        %v826 = vpack.c.b16 %v808, %v807
        %v827 = vpack.c.b16 %v810, %v809
        %v828 = vpack.c.b16 %v812, %v811
        %845 = vmatprep.subr.bf16.mxu0 0
        %846 = vmatpush1.bf16.msra.mxu0 %v813
        %847 = vmatprep.subr.bf16.mxu0 0
        %848 = vmatpush1.bf16.msra.mxu0 %v814
        %849 = vmatprep.subr.bf16.mxu0 0
        %850 = vmatpush1.bf16.msra.mxu0 %v815
        %851 = vmatprep.subr.bf16.mxu0 0
        %852 = vmatpush1.bf16.msra.mxu0 %v816
        %853 = vmatprep.subr.bf16.mxu0 0
        %854 = vmatpush1.bf16.msra.mxu0 %v817
        %855 = vmatprep.subr.bf16.mxu0 0
        %856 = vmatpush1.bf16.msra.mxu0 %v818
        %857 = vmatprep.subr.bf16.mxu0 0
        %858 = vmatpush1.bf16.msra.mxu0 %v819
        %859 = vmatprep.subr.bf16.mxu0 0
        %860 = vmatpush1.bf16.msra.mxu0 %v820
        %861 = vmatprep.subr.bf16.mxu0 0
        %862 = vmatpush1.bf16.msra.mxu0 %v821
        %863 = vmatprep.subr.bf16.mxu0 0
        %864 = vmatpush1.bf16.msra.mxu0 %v822
        %865 = vmatprep.subr.bf16.mxu0 0
        %866 = vmatpush1.bf16.msra.mxu0 %v823
        %867 = vmatprep.subr.bf16.mxu0 0
        %868 = vmatpush1.bf16.msra.mxu0 %v824
        %869 = vmatprep.subr.bf16.mxu0 0
        %870 = vmatpush1.bf16.msra.mxu0 %v825
        %871 = vmatprep.subr.bf16.mxu0 0
        %872 = vmatpush1.bf16.msra.mxu0 %v826
        %873 = vmatprep.subr.bf16.mxu0 0
        %874 = vmatpush1.bf16.msra.mxu0 %v827
        %875 = vmatprep.subr.bf16.mxu0 0
        %876 = vmatpush1.bf16.msra.mxu0 %v828
        %877 = vmatprep.mubr.bf16.mxu0 %v192
        %878 = vmatmul.mubr.bf16.gmra.mrb[0].mxu0 %v191
        %v879 = vpop.f32.mrb[0].mxu0
        %v880 = vadd.f32 0.0, %v879
        %v881 = vpop.f32.mrb[0].mxu0
        %v882 = vpop.f32.mrb[0].mxu0
        %v883 = vadd.f32 0.0, %v882
        %v884 = vpop.f32.mrb[0].mxu0
        %885 = vdwg.mxu0
        %886 = vmatprep.subr.bf16.mxu0 0
        %887 = vmatpush1.bf16.msra.mxu0 %v813
        %888 = vmatprep.subr.bf16.mxu0 0
        %889 = vmatpush1.bf16.msra.mxu0 %v814
        %890 = vmatprep.subr.bf16.mxu0 0
        %891 = vmatpush1.bf16.msra.mxu0 %v815
        %892 = vmatprep.subr.bf16.mxu0 0
        %893 = vmatpush1.bf16.msra.mxu0 %v816
        %894 = vmatprep.subr.bf16.mxu0 0
        %895 = vmatpush1.bf16.msra.mxu0 %v817
        %896 = vmatprep.subr.bf16.mxu0 0
        %897 = vmatpush1.bf16.msra.mxu0 %v818
        %898 = vmatprep.subr.bf16.mxu0 0
        %899 = vmatpush1.bf16.msra.mxu0 %v819
        %900 = vmatprep.subr.bf16.mxu0 0
        %901 = vmatpush1.bf16.msra.mxu0 %v820
        %902 = vmatprep.subr.bf16.mxu0 0
        %903 = vmatpush1.bf16.msra.mxu0 %v821
        %904 = vmatprep.subr.bf16.mxu0 0
        %905 = vmatpush1.bf16.msra.mxu0 %v822
        %906 = vmatprep.subr.bf16.mxu0 0
        %907 = vmatpush1.bf16.msra.mxu0 %v823
        %908 = vmatprep.subr.bf16.mxu0 0
        %909 = vmatpush1.bf16.msra.mxu0 %v824
        %910 = vmatprep.subr.bf16.mxu0 0
        %911 = vmatpush1.bf16.msra.mxu0 %v825
        %912 = vmatprep.subr.bf16.mxu0 0
        %913 = vmatpush1.bf16.msra.mxu0 %v826
        %914 = vmatprep.subr.bf16.mxu0 0
        %915 = vmatpush1.bf16.msra.mxu0 %v827
        %916 = vmatprep.subr.bf16.mxu0 0
        %917 = vmatpush1.bf16.msra.mxu0 %v828
        %918 = vmatprep.mubr.bf16.mxu0 %v182
        %919 = vmatmul.mubr.bf16.gmra.mrb[0].mxu0 %v181
        %v920 = vpop.f32.mrb[0].mxu0
        %v921 = vadd.f32 %v880, %v920
        %v922 = vpop.f32.mrb[0].mxu0
        %v923 = vpop.f32.mrb[0].mxu0
        %v924 = vadd.f32 %v883, %v923
        %v925 = vpop.f32.mrb[0].mxu0
        %926 = vdwg.mxu0
        %927 = vmatprep.subr.bf16.mxu0 0
        %928 = vmatpush1.bf16.msra.mxu0 %v813
        %929 = vmatprep.subr.bf16.mxu0 0
        %930 = vmatpush1.bf16.msra.mxu0 %v814
        %931 = vmatprep.subr.bf16.mxu0 0
        %932 = vmatpush1.bf16.msra.mxu0 %v815
        %933 = vmatprep.subr.bf16.mxu0 0
        %934 = vmatpush1.bf16.msra.mxu0 %v816
        %935 = vmatprep.subr.bf16.mxu0 0
        %936 = vmatpush1.bf16.msra.mxu0 %v817
        %937 = vmatprep.subr.bf16.mxu0 0
        %938 = vmatpush1.bf16.msra.mxu0 %v818
        %939 = vmatprep.subr.bf16.mxu0 0
        %940 = vmatpush1.bf16.msra.mxu0 %v819
        %941 = vmatprep.subr.bf16.mxu0 0
        %942 = vmatpush1.bf16.msra.mxu0 %v820
        %943 = vmatprep.subr.bf16.mxu0 0
        %944 = vmatpush1.bf16.msra.mxu0 %v821
        %945 = vmatprep.subr.bf16.mxu0 0
        %946 = vmatpush1.bf16.msra.mxu0 %v822
        %947 = vmatprep.subr.bf16.mxu0 0
        %948 = vmatpush1.bf16.msra.mxu0 %v823
        %949 = vmatprep.subr.bf16.mxu0 0
        %950 = vmatpush1.bf16.msra.mxu0 %v824
        %951 = vmatprep.subr.bf16.mxu0 0
        %952 = vmatpush1.bf16.msra.mxu0 %v825
        %953 = vmatprep.subr.bf16.mxu0 0
        %954 = vmatpush1.bf16.msra.mxu0 %v826
        %955 = vmatprep.subr.bf16.mxu0 0
        %956 = vmatpush1.bf16.msra.mxu0 %v827
        %957 = vmatprep.subr.bf16.mxu0 0
        %958 = vmatpush1.bf16.msra.mxu0 %v828
        %959 = vmatprep.mubr.bf16.mxu0 %v202
        %960 = vmatmul.mubr.bf16.gmra.mrb[0].mxu0 %v201
        %v961 = vpop.f32.mrb[0].mxu0
        %v962 = vadd.f32 0.0, %v961
        %v963 = vpop.f32.mrb[0].mxu0
        %v964 = vpop.f32.mrb[0].mxu0
        %v965 = vadd.f32 0.0, %v964
        %v966 = vpop.f32.mrb[0].mxu0
        %967 = vdwg.mxu0
        %v968 = vadd.f32 %v921, %v962
        %v969 = vadd.f32 %v924, %v965
        %s970 = scalar_lea.vmem %s163, 32 [#allocation2]
        %971 = vst.msk [vmem:[%s970] sm:$0xff] %vm456, %v968
        %972 = vst.msk [vmem:[%s970 + $0x8] sm:$0xff] %vm456, %v969
        %s973 = scalar_lea.vmem %s0, 384
        %v974 = vld [vmem:[%s973] sm:$0xf]
        %v975 = vld [vmem:[%s973 + $0x4] sm:$0xf]
        %v976 = vld [vmem:[%s973 + $0x8] sm:$0xf]
        %v977 = vld [vmem:[%s973 + $0xc] sm:$0xf]
        %v978 = vld [vmem:[%s973 + $0x10] sm:$0xf]
        %v979 = vld [vmem:[%s973 + $0x14] sm:$0xf]
        %v980 = vld [vmem:[%s973 + $0x18] sm:$0xf]
        %v981 = vld [vmem:[%s973 + $0x1c] sm:$0xf]
        %v982 = vld [vmem:[%s973 + $0x20] sm:$0xf]
        %v983 = vld [vmem:[%s973 + $0x24] sm:$0xf]
        %v984 = vld [vmem:[%s973 + $0x28] sm:$0xf]
        %v985 = vld [vmem:[%s973 + $0x2c] sm:$0xf]
        %v986 = vld [vmem:[%s973 + $0x30] sm:$0xf]
        %v987 = vld [vmem:[%s973 + $0x34] sm:$0xf]
        %v988 = vld [vmem:[%s973 + $0x38] sm:$0xf]
        %v989 = vld [vmem:[%s973 + $0x3c] sm:$0xf]
        %v990 = vld [vmem:[%s973 + $0x40] sm:$0xf]
        %v991 = vld [vmem:[%s973 + $0x44] sm:$0xf]
        %v992 = vld [vmem:[%s973 + $0x48] sm:$0xf]
        %v993 = vld [vmem:[%s973 + $0x4c] sm:$0xf]
        %v994 = vld [vmem:[%s973 + $0x50] sm:$0xf]
        %v995 = vld [vmem:[%s973 + $0x54] sm:$0xf]
        %v996 = vld [vmem:[%s973 + $0x58] sm:$0xf]
        %v997 = vld [vmem:[%s973 + $0x5c] sm:$0xf]
        %v998 = vld [vmem:[%s973 + $0x60] sm:$0xf]
        %v999 = vld [vmem:[%s973 + $0x64] sm:$0xf]
        %v1000 = vld [vmem:[%s973 + $0x68] sm:$0xf]
        %v1001 = vld [vmem:[%s973 + $0x6c] sm:$0xf]
        %v1002 = vld [vmem:[%s973 + $0x70] sm:$0xf]
        %v1003 = vld [vmem:[%s973 + $0x74] sm:$0xf]
        %v1004 = vld [vmem:[%s973 + $0x78] sm:$0xf]
        %v1005 = vld [vmem:[%s973 + $0x7c] sm:$0xf]
        %v1038 = vunpack.c.l.b16 %v974
        %v1039 = vunpack.c.l.b16 %v975
        %v1040 = vunpack.c.l.b16 %v976
        %v1041 = vunpack.c.l.b16 %v977
        %v1042 = vunpack.c.l.b16 %v978
        %v1043 = vunpack.c.l.b16 %v979
        %v1044 = vunpack.c.l.b16 %v980
        %v1045 = vunpack.c.l.b16 %v981
        %v1046 = vunpack.c.l.b16 %v982
        %v1047 = vunpack.c.l.b16 %v983
        %v1048 = vunpack.c.l.b16 %v984
        %v1049 = vunpack.c.l.b16 %v985
        %v1050 = vunpack.c.l.b16 %v986
        %v1051 = vunpack.c.l.b16 %v987
        %v1052 = vunpack.c.l.b16 %v988
        %v1053 = vunpack.c.l.b16 %v989
        %v1054 = vunpack.c.l.b16 %v990
        %v1055 = vunpack.c.l.b16 %v991
        %v1056 = vunpack.c.l.b16 %v992
        %v1057 = vunpack.c.l.b16 %v993
        %v1058 = vunpack.c.l.b16 %v994
        %v1059 = vunpack.c.l.b16 %v995
        %v1060 = vunpack.c.l.b16 %v996
        %v1061 = vunpack.c.l.b16 %v997
        %v1062 = vunpack.c.l.b16 %v998
        %v1063 = vunpack.c.l.b16 %v999
        %v1064 = vunpack.c.l.b16 %v1000
        %v1065 = vunpack.c.l.b16 %v1001
        %v1066 = vunpack.c.l.b16 %v1002
        %v1067 = vunpack.c.l.b16 %v1003
        %v1068 = vunpack.c.l.b16 %v1004
        %v1069 = vunpack.c.l.b16 %v1005
        %v1070 = vpack.c.b16 %v1039, %v1038
        %v1071 = vpack.c.b16 %v1041, %v1040
        %v1072 = vpack.c.b16 %v1043, %v1042
        %v1073 = vpack.c.b16 %v1045, %v1044
        %v1074 = vpack.c.b16 %v1047, %v1046
        %v1075 = vpack.c.b16 %v1049, %v1048
        %v1076 = vpack.c.b16 %v1051, %v1050
        %v1077 = vpack.c.b16 %v1053, %v1052
        %v1078 = vpack.c.b16 %v1055, %v1054
        %v1079 = vpack.c.b16 %v1057, %v1056
        %v1080 = vpack.c.b16 %v1059, %v1058
        %v1081 = vpack.c.b16 %v1061, %v1060
        %v1082 = vpack.c.b16 %v1063, %v1062
        %v1083 = vpack.c.b16 %v1065, %v1064
        %v1084 = vpack.c.b16 %v1067, %v1066
        %v1085 = vpack.c.b16 %v1069, %v1068
        %1102 = vmatprep.subr.bf16.mxu0 0
        %1103 = vmatpush1.bf16.msra.mxu0 %v1070
        %1104 = vmatprep.subr.bf16.mxu0 0
        %1105 = vmatpush1.bf16.msra.mxu0 %v1071
        %1106 = vmatprep.subr.bf16.mxu0 0
        %1107 = vmatpush1.bf16.msra.mxu0 %v1072
        %1108 = vmatprep.subr.bf16.mxu0 0
        %1109 = vmatpush1.bf16.msra.mxu0 %v1073
        %1110 = vmatprep.subr.bf16.mxu0 0
        %1111 = vmatpush1.bf16.msra.mxu0 %v1074
        %1112 = vmatprep.subr.bf16.mxu0 0
        %1113 = vmatpush1.bf16.msra.mxu0 %v1075
        %1114 = vmatprep.subr.bf16.mxu0 0
        %1115 = vmatpush1.bf16.msra.mxu0 %v1076
        %1116 = vmatprep.subr.bf16.mxu0 0
        %1117 = vmatpush1.bf16.msra.mxu0 %v1077
        %1118 = vmatprep.subr.bf16.mxu0 0
        %1119 = vmatpush1.bf16.msra.mxu0 %v1078
        %1120 = vmatprep.subr.bf16.mxu0 0
        %1121 = vmatpush1.bf16.msra.mxu0 %v1079
        %1122 = vmatprep.subr.bf16.mxu0 0
        %1123 = vmatpush1.bf16.msra.mxu0 %v1080
        %1124 = vmatprep.subr.bf16.mxu0 0
        %1125 = vmatpush1.bf16.msra.mxu0 %v1081
        %1126 = vmatprep.subr.bf16.mxu0 0
        %1127 = vmatpush1.bf16.msra.mxu0 %v1082
        %1128 = vmatprep.subr.bf16.mxu0 0
        %1129 = vmatpush1.bf16.msra.mxu0 %v1083
        %1130 = vmatprep.subr.bf16.mxu0 0
        %1131 = vmatpush1.bf16.msra.mxu0 %v1084
        %1132 = vmatprep.subr.bf16.mxu0 0
        %1133 = vmatpush1.bf16.msra.mxu0 %v1085
        %1134 = vmatprep.mubr.bf16.mxu0 %v192
        %1135 = vmatmul.mubr.bf16.gmra.mrb[0].mxu0 %v191
        %v1136 = vpop.f32.mrb[0].mxu0
        %v1137 = vadd.f32 0.0, %v1136
        %v1138 = vpop.f32.mrb[0].mxu0
        %v1139 = vpop.f32.mrb[0].mxu0
        %v1140 = vadd.f32 0.0, %v1139
        %v1141 = vpop.f32.mrb[0].mxu0
        %1142 = vdwg.mxu0
        %1143 = vmatprep.subr.bf16.mxu0 0
        %1144 = vmatpush1.bf16.msra.mxu0 %v1070
        %1145 = vmatprep.subr.bf16.mxu0 0
        %1146 = vmatpush1.bf16.msra.mxu0 %v1071
        %1147 = vmatprep.subr.bf16.mxu0 0
        %1148 = vmatpush1.bf16.msra.mxu0 %v1072
        %1149 = vmatprep.subr.bf16.mxu0 0
        %1150 = vmatpush1.bf16.msra.mxu0 %v1073
        %1151 = vmatprep.subr.bf16.mxu0 0
        %1152 = vmatpush1.bf16.msra.mxu0 %v1074
        %1153 = vmatprep.subr.bf16.mxu0 0
        %1154 = vmatpush1.bf16.msra.mxu0 %v1075
        %1155 = vmatprep.subr.bf16.mxu0 0
        %1156 = vmatpush1.bf16.msra.mxu0 %v1076
        %1157 = vmatprep.subr.bf16.mxu0 0
        %1158 = vmatpush1.bf16.msra.mxu0 %v1077
        %1159 = vmatprep.subr.bf16.mxu0 0
        %1160 = vmatpush1.bf16.msra.mxu0 %v1078
        %1161 = vmatprep.subr.bf16.mxu0 0
        %1162 = vmatpush1.bf16.msra.mxu0 %v1079
        %1163 = vmatprep.subr.bf16.mxu0 0
        %1164 = vmatpush1.bf16.msra.mxu0 %v1080
        %1165 = vmatprep.subr.bf16.mxu0 0
        %1166 = vmatpush1.bf16.msra.mxu0 %v1081
        %1167 = vmatprep.subr.bf16.mxu0 0
        %1168 = vmatpush1.bf16.msra.mxu0 %v1082
        %1169 = vmatprep.subr.bf16.mxu0 0
        %1170 = vmatpush1.bf16.msra.mxu0 %v1083
        %1171 = vmatprep.subr.bf16.mxu0 0
        %1172 = vmatpush1.bf16.msra.mxu0 %v1084
        %1173 = vmatprep.subr.bf16.mxu0 0
        %1174 = vmatpush1.bf16.msra.mxu0 %v1085
        %1175 = vmatprep.mubr.bf16.mxu0 %v182
        %1176 = vmatmul.mubr.bf16.gmra.mrb[0].mxu0 %v181
        %v1177 = vpop.f32.mrb[0].mxu0
        %v1178 = vadd.f32 %v1137, %v1177
        %v1179 = vpop.f32.mrb[0].mxu0
        %v1180 = vpop.f32.mrb[0].mxu0
        %v1181 = vadd.f32 %v1140, %v1180
        %v1182 = vpop.f32.mrb[0].mxu0
        %1183 = vdwg.mxu0
        %1184 = vmatprep.subr.bf16.mxu0 0
        %1185 = vmatpush1.bf16.msra.mxu0 %v1070
        %1186 = vmatprep.subr.bf16.mxu0 0
        %1187 = vmatpush1.bf16.msra.mxu0 %v1071
        %1188 = vmatprep.subr.bf16.mxu0 0
        %1189 = vmatpush1.bf16.msra.mxu0 %v1072
        %1190 = vmatprep.subr.bf16.mxu0 0
        %1191 = vmatpush1.bf16.msra.mxu0 %v1073
        %1192 = vmatprep.subr.bf16.mxu0 0
        %1193 = vmatpush1.bf16.msra.mxu0 %v1074
        %1194 = vmatprep.subr.bf16.mxu0 0
        %1195 = vmatpush1.bf16.msra.mxu0 %v1075
        %1196 = vmatprep.subr.bf16.mxu0 0
        %1197 = vmatpush1.bf16.msra.mxu0 %v1076
        %1198 = vmatprep.subr.bf16.mxu0 0
        %1199 = vmatpush1.bf16.msra.mxu0 %v1077
        %1200 = vmatprep.subr.bf16.mxu0 0
        %1201 = vmatpush1.bf16.msra.mxu0 %v1078
        %1202 = vmatprep.subr.bf16.mxu0 0
        %1203 = vmatpush1.bf16.msra.mxu0 %v1079
        %1204 = vmatprep.subr.bf16.mxu0 0
        %1205 = vmatpush1.bf16.msra.mxu0 %v1080
        %1206 = vmatprep.subr.bf16.mxu0 0
        %1207 = vmatpush1.bf16.msra.mxu0 %v1081
        %1208 = vmatprep.subr.bf16.mxu0 0
        %1209 = vmatpush1.bf16.msra.mxu0 %v1082
        %1210 = vmatprep.subr.bf16.mxu0 0
        %1211 = vmatpush1.bf16.msra.mxu0 %v1083
        %1212 = vmatprep.subr.bf16.mxu0 0
        %1213 = vmatpush1.bf16.msra.mxu0 %v1084
        %1214 = vmatprep.subr.bf16.mxu0 0
        %1215 = vmatpush1.bf16.msra.mxu0 %v1085
        %1216 = vmatprep.mubr.bf16.mxu0 %v202
        %1217 = vmatmul.mubr.bf16.gmra.mrb[0].mxu0 %v201
        %v1218 = vpop.f32.mrb[0].mxu0
        %v1219 = vadd.f32 0.0, %v1218
        %v1220 = vpop.f32.mrb[0].mxu0
        %v1221 = vpop.f32.mrb[0].mxu0
        %v1222 = vadd.f32 0.0, %v1221
        %v1223 = vpop.f32.mrb[0].mxu0
        %1224 = vdwg.mxu0
        %v1225 = vadd.f32 %v1178, %v1219
        %v1226 = vadd.f32 %v1181, %v1222
        %s1227 = scalar_lea.vmem %s163, 48 [#allocation2]
        %1228 = vst.msk [vmem:[%s1227] sm:$0xff] %vm456, %v1225
        %1229 = vst.msk [vmem:[%s1227 + $0x8] sm:$0xff] %vm456, %v1226
        %v1230 = vld [vmem:[%s173 + $0x10] sm:$0xff]
        %v1231 = vld [vmem:[%s173 + $0x18] sm:$0xff]
        %v1232 = vld [vmem:[%s173 + $0x30] sm:$0xff]
        %v1233 = vld [vmem:[%s173 + $0x38] sm:$0xff]
        %v1234 = vpack.c.bf16 %v1232, %v1230
        %v1235 = vpack.c.bf16 %v1233, %v1231
        %v1236 = vunpack.c.l.bf16 %v1234
        %v1237 = vunpack.c.l.bf16 %v1235
        %v1238 = vunpack.c.h.bf16 %v1234
        %v1239 = vunpack.c.h.bf16 %v1235
        %v1240 = vsub.f32 %v1230, %v1236
        %v1241 = vsub.f32 %v1231, %v1237
        %v1242 = vsub.f32 %v1232, %v1238
        %v1243 = vsub.f32 %v1233, %v1239
        %v1244 = vpack.c.bf16 %v1242, %v1240
        %v1245 = vpack.c.bf16 %v1243, %v1241
        %v1246 = vunpack.c.l.bf16 %v1244
        %v1247 = vunpack.c.l.bf16 %v1245
        %v1248 = vunpack.c.h.bf16 %v1244
        %v1249 = vunpack.c.h.bf16 %v1245
        %v1250 = vsub.f32 %v1240, %v1246
        %v1251 = vsub.f32 %v1241, %v1247
        %v1252 = vsub.f32 %v1242, %v1248
        %v1253 = vsub.f32 %v1243, %v1249
        %v1254 = vpack.c.bf16 %v1252, %v1250
        %v1255 = vpack.c.bf16 %v1253, %v1251
        %v1256 = vld [vmem:[%s0] sm:$0xf]
        %v1257 = vld [vmem:[%s0 + $0x4] sm:$0xf]
        %v1258 = vld [vmem:[%s0 + $0x8] sm:$0xf]
        %v1259 = vld [vmem:[%s0 + $0xc] sm:$0xf]
        %v1260 = vld [vmem:[%s0 + $0x10] sm:$0xf]
        %v1261 = vld [vmem:[%s0 + $0x14] sm:$0xf]
        %v1262 = vld [vmem:[%s0 + $0x18] sm:$0xf]
        %v1263 = vld [vmem:[%s0 + $0x1c] sm:$0xf]
        %v1264 = vld [vmem:[%s0 + $0x20] sm:$0xf]
        %v1265 = vld [vmem:[%s0 + $0x24] sm:$0xf]
        %v1266 = vld [vmem:[%s0 + $0x28] sm:$0xf]
        %v1267 = vld [vmem:[%s0 + $0x2c] sm:$0xf]
        %v1268 = vld [vmem:[%s0 + $0x30] sm:$0xf]
        %v1269 = vld [vmem:[%s0 + $0x34] sm:$0xf]
        %v1270 = vld [vmem:[%s0 + $0x38] sm:$0xf]
        %v1271 = vld [vmem:[%s0 + $0x3c] sm:$0xf]
        %v1272 = vld [vmem:[%s0 + $0x40] sm:$0xf]
        %v1273 = vld [vmem:[%s0 + $0x44] sm:$0xf]
        %v1274 = vld [vmem:[%s0 + $0x48] sm:$0xf]
        %v1275 = vld [vmem:[%s0 + $0x4c] sm:$0xf]
        %v1276 = vld [vmem:[%s0 + $0x50] sm:$0xf]
        %v1277 = vld [vmem:[%s0 + $0x54] sm:$0xf]
        %v1278 = vld [vmem:[%s0 + $0x58] sm:$0xf]
        %v1279 = vld [vmem:[%s0 + $0x5c] sm:$0xf]
        %v1280 = vld [vmem:[%s0 + $0x60] sm:$0xf]
        %v1281 = vld [vmem:[%s0 + $0x64] sm:$0xf]
        %v1282 = vld [vmem:[%s0 + $0x68] sm:$0xf]
        %v1283 = vld [vmem:[%s0 + $0x6c] sm:$0xf]
        %v1284 = vld [vmem:[%s0 + $0x70] sm:$0xf]
        %v1285 = vld [vmem:[%s0 + $0x74] sm:$0xf]
        %v1286 = vld [vmem:[%s0 + $0x78] sm:$0xf]
        %v1287 = vld [vmem:[%s0 + $0x7c] sm:$0xf]
        %v1320 = vunpack.c.l.b16 %v1256
        %v1321 = vunpack.c.l.b16 %v1257
        %v1322 = vunpack.c.l.b16 %v1258
        %v1323 = vunpack.c.l.b16 %v1259
        %v1324 = vunpack.c.l.b16 %v1260
        %v1325 = vunpack.c.l.b16 %v1261
        %v1326 = vunpack.c.l.b16 %v1262
        %v1327 = vunpack.c.l.b16 %v1263
        %v1328 = vunpack.c.l.b16 %v1264
        %v1329 = vunpack.c.l.b16 %v1265
        %v1330 = vunpack.c.l.b16 %v1266
        %v1331 = vunpack.c.l.b16 %v1267
        %v1332 = vunpack.c.l.b16 %v1268
        %v1333 = vunpack.c.l.b16 %v1269
        %v1334 = vunpack.c.l.b16 %v1270
        %v1335 = vunpack.c.l.b16 %v1271
        %v1336 = vunpack.c.l.b16 %v1272
        %v1337 = vunpack.c.l.b16 %v1273
        %v1338 = vunpack.c.l.b16 %v1274
        %v1339 = vunpack.c.l.b16 %v1275
        %v1340 = vunpack.c.l.b16 %v1276
        %v1341 = vunpack.c.l.b16 %v1277
        %v1342 = vunpack.c.l.b16 %v1278
        %v1343 = vunpack.c.l.b16 %v1279
        %v1344 = vunpack.c.l.b16 %v1280
        %v1345 = vunpack.c.l.b16 %v1281
        %v1346 = vunpack.c.l.b16 %v1282
        %v1347 = vunpack.c.l.b16 %v1283
        %v1348 = vunpack.c.l.b16 %v1284
        %v1349 = vunpack.c.l.b16 %v1285
        %v1350 = vunpack.c.l.b16 %v1286
        %v1351 = vunpack.c.l.b16 %v1287
        %v1352 = vpack.c.b16 %v1321, %v1320
        %v1353 = vpack.c.b16 %v1323, %v1322
        %v1354 = vpack.c.b16 %v1325, %v1324
        %v1355 = vpack.c.b16 %v1327, %v1326
        %v1356 = vpack.c.b16 %v1329, %v1328
        %v1357 = vpack.c.b16 %v1331, %v1330
        %v1358 = vpack.c.b16 %v1333, %v1332
        %v1359 = vpack.c.b16 %v1335, %v1334
        %v1360 = vpack.c.b16 %v1337, %v1336
        %v1361 = vpack.c.b16 %v1339, %v1338
        %v1362 = vpack.c.b16 %v1341, %v1340
        %v1363 = vpack.c.b16 %v1343, %v1342
        %v1364 = vpack.c.b16 %v1345, %v1344
        %v1365 = vpack.c.b16 %v1347, %v1346
        %v1366 = vpack.c.b16 %v1349, %v1348
        %v1367 = vpack.c.b16 %v1351, %v1350
        %1384 = vmatprep.subr.bf16.mxu0 0
        %1385 = vmatpush1.bf16.msra.mxu0 %v1352
        %1386 = vmatprep.subr.bf16.mxu0 0
        %1387 = vmatpush1.bf16.msra.mxu0 %v1353
        %1388 = vmatprep.subr.bf16.mxu0 0
        %1389 = vmatpush1.bf16.msra.mxu0 %v1354
        %1390 = vmatprep.subr.bf16.mxu0 0
        %1391 = vmatpush1.bf16.msra.mxu0 %v1355
        %1392 = vmatprep.subr.bf16.mxu0 0
        %1393 = vmatpush1.bf16.msra.mxu0 %v1356
        %1394 = vmatprep.subr.bf16.mxu0 0
        %1395 = vmatpush1.bf16.msra.mxu0 %v1357
        %1396 = vmatprep.subr.bf16.mxu0 0
        %1397 = vmatpush1.bf16.msra.mxu0 %v1358
        %1398 = vmatprep.subr.bf16.mxu0 0
        %1399 = vmatpush1.bf16.msra.mxu0 %v1359
        %1400 = vmatprep.subr.bf16.mxu0 0
        %1401 = vmatpush1.bf16.msra.mxu0 %v1360
        %1402 = vmatprep.subr.bf16.mxu0 0
        %1403 = vmatpush1.bf16.msra.mxu0 %v1361
        %1404 = vmatprep.subr.bf16.mxu0 0
        %1405 = vmatpush1.bf16.msra.mxu0 %v1362
        %1406 = vmatprep.subr.bf16.mxu0 0
        %1407 = vmatpush1.bf16.msra.mxu0 %v1363
        %1408 = vmatprep.subr.bf16.mxu0 0
        %1409 = vmatpush1.bf16.msra.mxu0 %v1364
        %1410 = vmatprep.subr.bf16.mxu0 0
        %1411 = vmatpush1.bf16.msra.mxu0 %v1365
        %1412 = vmatprep.subr.bf16.mxu0 0
        %1413 = vmatpush1.bf16.msra.mxu0 %v1366
        %1414 = vmatprep.subr.bf16.mxu0 0
        %1415 = vmatpush1.bf16.msra.mxu0 %v1367
        %1416 = vmatprep.mubr.bf16.mxu0 %v1245
        %1417 = vmatmul.mubr.bf16.gmra.mrb[0].mxu0 %v1244
        %v1418 = vpop.f32.mrb[0].mxu0
        %v1419 = vadd.f32 0.0, %v1418
        %v1420 = vpop.f32.mrb[0].mxu0
        %v1421 = vpop.f32.mrb[0].mxu0
        %v1422 = vadd.f32 0.0, %v1421
        %v1423 = vpop.f32.mrb[0].mxu0
        %1424 = vdwg.mxu0
        %1425 = vmatprep.subr.bf16.mxu0 0
        %1426 = vmatpush1.bf16.msra.mxu0 %v1352
        %1427 = vmatprep.subr.bf16.mxu0 0
        %1428 = vmatpush1.bf16.msra.mxu0 %v1353
        %1429 = vmatprep.subr.bf16.mxu0 0
        %1430 = vmatpush1.bf16.msra.mxu0 %v1354
        %1431 = vmatprep.subr.bf16.mxu0 0
        %1432 = vmatpush1.bf16.msra.mxu0 %v1355
        %1433 = vmatprep.subr.bf16.mxu0 0
        %1434 = vmatpush1.bf16.msra.mxu0 %v1356
        %1435 = vmatprep.subr.bf16.mxu0 0
        %1436 = vmatpush1.bf16.msra.mxu0 %v1357
        %1437 = vmatprep.subr.bf16.mxu0 0
        %1438 = vmatpush1.bf16.msra.mxu0 %v1358
        %1439 = vmatprep.subr.bf16.mxu0 0
        %1440 = vmatpush1.bf16.msra.mxu0 %v1359
        %1441 = vmatprep.subr.bf16.mxu0 0
        %1442 = vmatpush1.bf16.msra.mxu0 %v1360
        %1443 = vmatprep.subr.bf16.mxu0 0
        %1444 = vmatpush1.bf16.msra.mxu0 %v1361
        %1445 = vmatprep.subr.bf16.mxu0 0
        %1446 = vmatpush1.bf16.msra.mxu0 %v1362
        %1447 = vmatprep.subr.bf16.mxu0 0
        %1448 = vmatpush1.bf16.msra.mxu0 %v1363
        %1449 = vmatprep.subr.bf16.mxu0 0
        %1450 = vmatpush1.bf16.msra.mxu0 %v1364
        %1451 = vmatprep.subr.bf16.mxu0 0
        %1452 = vmatpush1.bf16.msra.mxu0 %v1365
        %1453 = vmatprep.subr.bf16.mxu0 0
        %1454 = vmatpush1.bf16.msra.mxu0 %v1366
        %1455 = vmatprep.subr.bf16.mxu0 0
        %1456 = vmatpush1.bf16.msra.mxu0 %v1367
        %1457 = vmatprep.mubr.bf16.mxu0 %v1235
        %1458 = vmatmul.mubr.bf16.gmra.mrb[0].mxu0 %v1234
        %v1459 = vpop.f32.mrb[0].mxu0
        %v1460 = vadd.f32 %v1419, %v1459
        %v1461 = vpop.f32.mrb[0].mxu0
        %v1462 = vpop.f32.mrb[0].mxu0
        %v1463 = vadd.f32 %v1422, %v1462
        %v1464 = vpop.f32.mrb[0].mxu0
        %1465 = vdwg.mxu0
        %1466 = vmatprep.subr.bf16.mxu0 0
        %1467 = vmatpush1.bf16.msra.mxu0 %v1352
        %1468 = vmatprep.subr.bf16.mxu0 0
        %1469 = vmatpush1.bf16.msra.mxu0 %v1353
        %1470 = vmatprep.subr.bf16.mxu0 0
        %1471 = vmatpush1.bf16.msra.mxu0 %v1354
        %1472 = vmatprep.subr.bf16.mxu0 0
        %1473 = vmatpush1.bf16.msra.mxu0 %v1355
        %1474 = vmatprep.subr.bf16.mxu0 0
        %1475 = vmatpush1.bf16.msra.mxu0 %v1356
        %1476 = vmatprep.subr.bf16.mxu0 0
        %1477 = vmatpush1.bf16.msra.mxu0 %v1357
        %1478 = vmatprep.subr.bf16.mxu0 0
        %1479 = vmatpush1.bf16.msra.mxu0 %v1358
        %1480 = vmatprep.subr.bf16.mxu0 0
        %1481 = vmatpush1.bf16.msra.mxu0 %v1359
        %1482 = vmatprep.subr.bf16.mxu0 0
        %1483 = vmatpush1.bf16.msra.mxu0 %v1360
        %1484 = vmatprep.subr.bf16.mxu0 0
        %1485 = vmatpush1.bf16.msra.mxu0 %v1361
        %1486 = vmatprep.subr.bf16.mxu0 0
        %1487 = vmatpush1.bf16.msra.mxu0 %v1362
        %1488 = vmatprep.subr.bf16.mxu0 0
        %1489 = vmatpush1.bf16.msra.mxu0 %v1363
        %1490 = vmatprep.subr.bf16.mxu0 0
        %1491 = vmatpush1.bf16.msra.mxu0 %v1364
        %1492 = vmatprep.subr.bf16.mxu0 0
        %1493 = vmatpush1.bf16.msra.mxu0 %v1365
        %1494 = vmatprep.subr.bf16.mxu0 0
        %1495 = vmatpush1.bf16.msra.mxu0 %v1366
        %1496 = vmatprep.subr.bf16.mxu0 0
        %1497 = vmatpush1.bf16.msra.mxu0 %v1367
        %1498 = vmatprep.mubr.bf16.mxu0 %v1255
        %1499 = vmatmul.mubr.bf16.gmra.mrb[0].mxu0 %v1254
        %v1500 = vpop.f32.mrb[0].mxu0
        %v1501 = vadd.f32 0.0, %v1500
        %v1502 = vpop.f32.mrb[0].mxu0
        %v1503 = vpop.f32.mrb[0].mxu0
        %v1504 = vadd.f32 0.0, %v1503
        %v1505 = vpop.f32.mrb[0].mxu0
        %1506 = vdwg.mxu0
        %v1507 = vadd.f32 %v1460, %v1501
        %v1508 = vadd.f32 %v1463, %v1504
        %s1509 = scalar_lea.vmem %s163, 64 [#allocation2]
        %1510 = vst.msk [vmem:[%s1509] sm:$0xff] %vm456, %v1507
        %1511 = vst.msk [vmem:[%s1509 + $0x8] sm:$0xff] %vm456, %v1508
        %v1512 = vld [vmem:[%s459] sm:$0xf]
        %v1513 = vld [vmem:[%s459 + $0x4] sm:$0xf]
        %v1514 = vld [vmem:[%s459 + $0x8] sm:$0xf]
        %v1515 = vld [vmem:[%s459 + $0xc] sm:$0xf]
        %v1516 = vld [vmem:[%s459 + $0x10] sm:$0xf]
        %v1517 = vld [vmem:[%s459 + $0x14] sm:$0xf]
        %v1518 = vld [vmem:[%s459 + $0x18] sm:$0xf]
        %v1519 = vld [vmem:[%s459 + $0x1c] sm:$0xf]
        %v1520 = vld [vmem:[%s459 + $0x20] sm:$0xf]
        %v1521 = vld [vmem:[%s459 + $0x24] sm:$0xf]
        %v1522 = vld [vmem:[%s459 + $0x28] sm:$0xf]
        %v1523 = vld [vmem:[%s459 + $0x2c] sm:$0xf]
        %v1524 = vld [vmem:[%s459 + $0x30] sm:$0xf]
        %v1525 = vld [vmem:[%s459 + $0x34] sm:$0xf]
        %v1526 = vld [vmem:[%s459 + $0x38] sm:$0xf]
        %v1527 = vld [vmem:[%s459 + $0x3c] sm:$0xf]
        %v1528 = vld [vmem:[%s459 + $0x40] sm:$0xf]
        %v1529 = vld [vmem:[%s459 + $0x44] sm:$0xf]
        %v1530 = vld [vmem:[%s459 + $0x48] sm:$0xf]
        %v1531 = vld [vmem:[%s459 + $0x4c] sm:$0xf]
        %v1532 = vld [vmem:[%s459 + $0x50] sm:$0xf]
        %v1533 = vld [vmem:[%s459 + $0x54] sm:$0xf]
        %v1534 = vld [vmem:[%s459 + $0x58] sm:$0xf]
        %v1535 = vld [vmem:[%s459 + $0x5c] sm:$0xf]
        %v1536 = vld [vmem:[%s459 + $0x60] sm:$0xf]
        %v1537 = vld [vmem:[%s459 + $0x64] sm:$0xf]
        %v1538 = vld [vmem:[%s459 + $0x68] sm:$0xf]
        %v1539 = vld [vmem:[%s459 + $0x6c] sm:$0xf]
        %v1540 = vld [vmem:[%s459 + $0x70] sm:$0xf]
        %v1541 = vld [vmem:[%s459 + $0x74] sm:$0xf]
        %v1542 = vld [vmem:[%s459 + $0x78] sm:$0xf]
        %v1543 = vld [vmem:[%s459 + $0x7c] sm:$0xf]
        %v1576 = vunpack.c.l.b16 %v1512
        %v1577 = vunpack.c.l.b16 %v1513
        %v1578 = vunpack.c.l.b16 %v1514
        %v1579 = vunpack.c.l.b16 %v1515
        %v1580 = vunpack.c.l.b16 %v1516
        %v1581 = vunpack.c.l.b16 %v1517
        %v1582 = vunpack.c.l.b16 %v1518
        %v1583 = vunpack.c.l.b16 %v1519
        %v1584 = vunpack.c.l.b16 %v1520
        %v1585 = vunpack.c.l.b16 %v1521
        %v1586 = vunpack.c.l.b16 %v1522
        %v1587 = vunpack.c.l.b16 %v1523
        %v1588 = vunpack.c.l.b16 %v1524
        %v1589 = vunpack.c.l.b16 %v1525
        %v1590 = vunpack.c.l.b16 %v1526
        %v1591 = vunpack.c.l.b16 %v1527
        %v1592 = vunpack.c.l.b16 %v1528
        %v1593 = vunpack.c.l.b16 %v1529
        %v1594 = vunpack.c.l.b16 %v1530
        %v1595 = vunpack.c.l.b16 %v1531
        %v1596 = vunpack.c.l.b16 %v1532
        %v1597 = vunpack.c.l.b16 %v1533
        %v1598 = vunpack.c.l.b16 %v1534
        %v1599 = vunpack.c.l.b16 %v1535
        %v1600 = vunpack.c.l.b16 %v1536
        %v1601 = vunpack.c.l.b16 %v1537
        %v1602 = vunpack.c.l.b16 %v1538
        %v1603 = vunpack.c.l.b16 %v1539
        %v1604 = vunpack.c.l.b16 %v1540
        %v1605 = vunpack.c.l.b16 %v1541
        %v1606 = vunpack.c.l.b16 %v1542
        %v1607 = vunpack.c.l.b16 %v1543
        %v1608 = vpack.c.b16 %v1577, %v1576
        %v1609 = vpack.c.b16 %v1579, %v1578
        %v1610 = vpack.c.b16 %v1581, %v1580
        %v1611 = vpack.c.b16 %v1583, %v1582
        %v1612 = vpack.c.b16 %v1585, %v1584
        %v1613 = vpack.c.b16 %v1587, %v1586
        %v1614 = vpack.c.b16 %v1589, %v1588
        %v1615 = vpack.c.b16 %v1591, %v1590
        %v1616 = vpack.c.b16 %v1593, %v1592
        %v1617 = vpack.c.b16 %v1595, %v1594
        %v1618 = vpack.c.b16 %v1597, %v1596
        %v1619 = vpack.c.b16 %v1599, %v1598
        %v1620 = vpack.c.b16 %v1601, %v1600
        %v1621 = vpack.c.b16 %v1603, %v1602
        %v1622 = vpack.c.b16 %v1605, %v1604
        %v1623 = vpack.c.b16 %v1607, %v1606
        %1640 = vmatprep.subr.bf16.mxu0 0
        %1641 = vmatpush1.bf16.msra.mxu0 %v1608
        %1642 = vmatprep.subr.bf16.mxu0 0
        %1643 = vmatpush1.bf16.msra.mxu0 %v1609
        %1644 = vmatprep.subr.bf16.mxu0 0
        %1645 = vmatpush1.bf16.msra.mxu0 %v1610
        %1646 = vmatprep.subr.bf16.mxu0 0
        %1647 = vmatpush1.bf16.msra.mxu0 %v1611
        %1648 = vmatprep.subr.bf16.mxu0 0
        %1649 = vmatpush1.bf16.msra.mxu0 %v1612
        %1650 = vmatprep.subr.bf16.mxu0 0
        %1651 = vmatpush1.bf16.msra.mxu0 %v1613
        %1652 = vmatprep.subr.bf16.mxu0 0
        %1653 = vmatpush1.bf16.msra.mxu0 %v1614
        %1654 = vmatprep.subr.bf16.mxu0 0
        %1655 = vmatpush1.bf16.msra.mxu0 %v1615
        %1656 = vmatprep.subr.bf16.mxu0 0
        %1657 = vmatpush1.bf16.msra.mxu0 %v1616
        %1658 = vmatprep.subr.bf16.mxu0 0
        %1659 = vmatpush1.bf16.msra.mxu0 %v1617
        %1660 = vmatprep.subr.bf16.mxu0 0
        %1661 = vmatpush1.bf16.msra.mxu0 %v1618
        %1662 = vmatprep.subr.bf16.mxu0 0
        %1663 = vmatpush1.bf16.msra.mxu0 %v1619
        %1664 = vmatprep.subr.bf16.mxu0 0
        %1665 = vmatpush1.bf16.msra.mxu0 %v1620
        %1666 = vmatprep.subr.bf16.mxu0 0
        %1667 = vmatpush1.bf16.msra.mxu0 %v1621
        %1668 = vmatprep.subr.bf16.mxu0 0
        %1669 = vmatpush1.bf16.msra.mxu0 %v1622
        %1670 = vmatprep.subr.bf16.mxu0 0
        %1671 = vmatpush1.bf16.msra.mxu0 %v1623
        %1672 = vmatprep.mubr.bf16.mxu0 %v1245
        %1673 = vmatmul.mubr.bf16.gmra.mrb[0].mxu0 %v1244
        %v1674 = vpop.f32.mrb[0].mxu0
        %v1675 = vadd.f32 0.0, %v1674
        %v1676 = vpop.f32.mrb[0].mxu0
        %v1677 = vpop.f32.mrb[0].mxu0
        %v1678 = vadd.f32 0.0, %v1677
        %v1679 = vpop.f32.mrb[0].mxu0
        %1680 = vdwg.mxu0
        %1681 = vmatprep.subr.bf16.mxu0 0
        %1682 = vmatpush1.bf16.msra.mxu0 %v1608
        %1683 = vmatprep.subr.bf16.mxu0 0
        %1684 = vmatpush1.bf16.msra.mxu0 %v1609
        %1685 = vmatprep.subr.bf16.mxu0 0
        %1686 = vmatpush1.bf16.msra.mxu0 %v1610
        %1687 = vmatprep.subr.bf16.mxu0 0
        %1688 = vmatpush1.bf16.msra.mxu0 %v1611
        %1689 = vmatprep.subr.bf16.mxu0 0
        %1690 = vmatpush1.bf16.msra.mxu0 %v1612
        %1691 = vmatprep.subr.bf16.mxu0 0
        %1692 = vmatpush1.bf16.msra.mxu0 %v1613
        %1693 = vmatprep.subr.bf16.mxu0 0
        %1694 = vmatpush1.bf16.msra.mxu0 %v1614
        %1695 = vmatprep.subr.bf16.mxu0 0
        %1696 = vmatpush1.bf16.msra.mxu0 %v1615
        %1697 = vmatprep.subr.bf16.mxu0 0
        %1698 = vmatpush1.bf16.msra.mxu0 %v1616
        %1699 = vmatprep.subr.bf16.mxu0 0
        %1700 = vmatpush1.bf16.msra.mxu0 %v1617
        %1701 = vmatprep.subr.bf16.mxu0 0
        %1702 = vmatpush1.bf16.msra.mxu0 %v1618
        %1703 = vmatprep.subr.bf16.mxu0 0
        %1704 = vmatpush1.bf16.msra.mxu0 %v1619
        %1705 = vmatprep.subr.bf16.mxu0 0
        %1706 = vmatpush1.bf16.msra.mxu0 %v1620
        %1707 = vmatprep.subr.bf16.mxu0 0
        %1708 = vmatpush1.bf16.msra.mxu0 %v1621
        %1709 = vmatprep.subr.bf16.mxu0 0
        %1710 = vmatpush1.bf16.msra.mxu0 %v1622
        %1711 = vmatprep.subr.bf16.mxu0 0
        %1712 = vmatpush1.bf16.msra.mxu0 %v1623
        %1713 = vmatprep.mubr.bf16.mxu0 %v1235
        %1714 = vmatmul.mubr.bf16.gmra.mrb[0].mxu0 %v1234
        %v1715 = vpop.f32.mrb[0].mxu0
        %v1716 = vadd.f32 %v1675, %v1715
        %v1717 = vpop.f32.mrb[0].mxu0
        %v1718 = vpop.f32.mrb[0].mxu0
        %v1719 = vadd.f32 %v1678, %v1718
        %v1720 = vpop.f32.mrb[0].mxu0
        %1721 = vdwg.mxu0
        %1722 = vmatprep.subr.bf16.mxu0 0
        %1723 = vmatpush1.bf16.msra.mxu0 %v1608
        %1724 = vmatprep.subr.bf16.mxu0 0
        %1725 = vmatpush1.bf16.msra.mxu0 %v1609
        %1726 = vmatprep.subr.bf16.mxu0 0
        %1727 = vmatpush1.bf16.msra.mxu0 %v1610
        %1728 = vmatprep.subr.bf16.mxu0 0
        %1729 = vmatpush1.bf16.msra.mxu0 %v1611
        %1730 = vmatprep.subr.bf16.mxu0 0
        %1731 = vmatpush1.bf16.msra.mxu0 %v1612
        %1732 = vmatprep.subr.bf16.mxu0 0
        %1733 = vmatpush1.bf16.msra.mxu0 %v1613
        %1734 = vmatprep.subr.bf16.mxu0 0
        %1735 = vmatpush1.bf16.msra.mxu0 %v1614
        %1736 = vmatprep.subr.bf16.mxu0 0
        %1737 = vmatpush1.bf16.msra.mxu0 %v1615
        %1738 = vmatprep.subr.bf16.mxu0 0
        %1739 = vmatpush1.bf16.msra.mxu0 %v1616
        %1740 = vmatprep.subr.bf16.mxu0 0
        %1741 = vmatpush1.bf16.msra.mxu0 %v1617
        %1742 = vmatprep.subr.bf16.mxu0 0
        %1743 = vmatpush1.bf16.msra.mxu0 %v1618
        %1744 = vmatprep.subr.bf16.mxu0 0
        %1745 = vmatpush1.bf16.msra.mxu0 %v1619
        %1746 = vmatprep.subr.bf16.mxu0 0
        %1747 = vmatpush1.bf16.msra.mxu0 %v1620
        %1748 = vmatprep.subr.bf16.mxu0 0
        %1749 = vmatpush1.bf16.msra.mxu0 %v1621
        %1750 = vmatprep.subr.bf16.mxu0 0
        %1751 = vmatpush1.bf16.msra.mxu0 %v1622
        %1752 = vmatprep.subr.bf16.mxu0 0
        %1753 = vmatpush1.bf16.msra.mxu0 %v1623
        %1754 = vmatprep.mubr.bf16.mxu0 %v1255
        %1755 = vmatmul.mubr.bf16.gmra.mrb[0].mxu0 %v1254
        %v1756 = vpop.f32.mrb[0].mxu0
        %v1757 = vadd.f32 0.0, %v1756
        %v1758 = vpop.f32.mrb[0].mxu0
        %v1759 = vpop.f32.mrb[0].mxu0
        %v1760 = vadd.f32 0.0, %v1759
        %v1761 = vpop.f32.mrb[0].mxu0
        %1762 = vdwg.mxu0
        %v1763 = vadd.f32 %v1716, %v1757
        %v1764 = vadd.f32 %v1719, %v1760
        %s1765 = scalar_lea.vmem %s163, 80 [#allocation2]
        %1766 = vst.msk [vmem:[%s1765] sm:$0xff] %vm456, %v1763
        %1767 = vst.msk [vmem:[%s1765 + $0x8] sm:$0xff] %vm456, %v1764
        %v1768 = vld [vmem:[%s716] sm:$0xf]
        %v1769 = vld [vmem:[%s716 + $0x4] sm:$0xf]
        %v1770 = vld [vmem:[%s716 + $0x8] sm:$0xf]
        %v1771 = vld [vmem:[%s716 + $0xc] sm:$0xf]
        %v1772 = vld [vmem:[%s716 + $0x10] sm:$0xf]
        %v1773 = vld [vmem:[%s716 + $0x14] sm:$0xf]
        %v1774 = vld [vmem:[%s716 + $0x18] sm:$0xf]
        %v1775 = vld [vmem:[%s716 + $0x1c] sm:$0xf]
        %v1776 = vld [vmem:[%s716 + $0x20] sm:$0xf]
        %v1777 = vld [vmem:[%s716 + $0x24] sm:$0xf]
        %v1778 = vld [vmem:[%s716 + $0x28] sm:$0xf]
        %v1779 = vld [vmem:[%s716 + $0x2c] sm:$0xf]
        %v1780 = vld [vmem:[%s716 + $0x30] sm:$0xf]
        %v1781 = vld [vmem:[%s716 + $0x34] sm:$0xf]
        %v1782 = vld [vmem:[%s716 + $0x38] sm:$0xf]
        %v1783 = vld [vmem:[%s716 + $0x3c] sm:$0xf]
        %v1784 = vld [vmem:[%s716 + $0x40] sm:$0xf]
        %v1785 = vld [vmem:[%s716 + $0x44] sm:$0xf]
        %v1786 = vld [vmem:[%s716 + $0x48] sm:$0xf]
        %v1787 = vld [vmem:[%s716 + $0x4c] sm:$0xf]
        %v1788 = vld [vmem:[%s716 + $0x50] sm:$0xf]
        %v1789 = vld [vmem:[%s716 + $0x54] sm:$0xf]
        %v1790 = vld [vmem:[%s716 + $0x58] sm:$0xf]
        %v1791 = vld [vmem:[%s716 + $0x5c] sm:$0xf]
        %v1792 = vld [vmem:[%s716 + $0x60] sm:$0xf]
        %v1793 = vld [vmem:[%s716 + $0x64] sm:$0xf]
        %v1794 = vld [vmem:[%s716 + $0x68] sm:$0xf]
        %v1795 = vld [vmem:[%s716 + $0x6c] sm:$0xf]
        %v1796 = vld [vmem:[%s716 + $0x70] sm:$0xf]
        %v1797 = vld [vmem:[%s716 + $0x74] sm:$0xf]
        %v1798 = vld [vmem:[%s716 + $0x78] sm:$0xf]
        %v1799 = vld [vmem:[%s716 + $0x7c] sm:$0xf]
        %v1832 = vunpack.c.l.b16 %v1768
        %v1833 = vunpack.c.l.b16 %v1769
        %v1834 = vunpack.c.l.b16 %v1770
        %v1835 = vunpack.c.l.b16 %v1771
        %v1836 = vunpack.c.l.b16 %v1772
        %v1837 = vunpack.c.l.b16 %v1773
        %v1838 = vunpack.c.l.b16 %v1774
        %v1839 = vunpack.c.l.b16 %v1775
        %v1840 = vunpack.c.l.b16 %v1776
        %v1841 = vunpack.c.l.b16 %v1777
        %v1842 = vunpack.c.l.b16 %v1778
        %v1843 = vunpack.c.l.b16 %v1779
        %v1844 = vunpack.c.l.b16 %v1780
        %v1845 = vunpack.c.l.b16 %v1781
        %v1846 = vunpack.c.l.b16 %v1782
        %v1847 = vunpack.c.l.b16 %v1783
        %v1848 = vunpack.c.l.b16 %v1784
        %v1849 = vunpack.c.l.b16 %v1785
        %v1850 = vunpack.c.l.b16 %v1786
        %v1851 = vunpack.c.l.b16 %v1787
        %v1852 = vunpack.c.l.b16 %v1788
        %v1853 = vunpack.c.l.b16 %v1789
        %v1854 = vunpack.c.l.b16 %v1790
        %v1855 = vunpack.c.l.b16 %v1791
        %v1856 = vunpack.c.l.b16 %v1792
        %v1857 = vunpack.c.l.b16 %v1793
        %v1858 = vunpack.c.l.b16 %v1794
        %v1859 = vunpack.c.l.b16 %v1795
        %v1860 = vunpack.c.l.b16 %v1796
        %v1861 = vunpack.c.l.b16 %v1797
        %v1862 = vunpack.c.l.b16 %v1798
        %v1863 = vunpack.c.l.b16 %v1799
        %v1864 = vpack.c.b16 %v1833, %v1832
        %v1865 = vpack.c.b16 %v1835, %v1834
        %v1866 = vpack.c.b16 %v1837, %v1836
        %v1867 = vpack.c.b16 %v1839, %v1838
        %v1868 = vpack.c.b16 %v1841, %v1840
        %v1869 = vpack.c.b16 %v1843, %v1842
        %v1870 = vpack.c.b16 %v1845, %v1844
        %v1871 = vpack.c.b16 %v1847, %v1846
        %v1872 = vpack.c.b16 %v1849, %v1848
        %v1873 = vpack.c.b16 %v1851, %v1850
        %v1874 = vpack.c.b16 %v1853, %v1852
        %v1875 = vpack.c.b16 %v1855, %v1854
        %v1876 = vpack.c.b16 %v1857, %v1856
        %v1877 = vpack.c.b16 %v1859, %v1858
        %v1878 = vpack.c.b16 %v1861, %v1860
        %v1879 = vpack.c.b16 %v1863, %v1862
        %1896 = vmatprep.subr.bf16.mxu0 0
        %1897 = vmatpush1.bf16.msra.mxu0 %v1864
        %1898 = vmatprep.subr.bf16.mxu0 0
        %1899 = vmatpush1.bf16.msra.mxu0 %v1865
        %1900 = vmatprep.subr.bf16.mxu0 0
        %1901 = vmatpush1.bf16.msra.mxu0 %v1866
        %1902 = vmatprep.subr.bf16.mxu0 0
        %1903 = vmatpush1.bf16.msra.mxu0 %v1867
        %1904 = vmatprep.subr.bf16.mxu0 0
        %1905 = vmatpush1.bf16.msra.mxu0 %v1868
        %1906 = vmatprep.subr.bf16.mxu0 0
        %1907 = vmatpush1.bf16.msra.mxu0 %v1869
        %1908 = vmatprep.subr.bf16.mxu0 0
        %1909 = vmatpush1.bf16.msra.mxu0 %v1870
        %1910 = vmatprep.subr.bf16.mxu0 0
        %1911 = vmatpush1.bf16.msra.mxu0 %v1871
        %1912 = vmatprep.subr.bf16.mxu0 0
        %1913 = vmatpush1.bf16.msra.mxu0 %v1872
        %1914 = vmatprep.subr.bf16.mxu0 0
        %1915 = vmatpush1.bf16.msra.mxu0 %v1873
        %1916 = vmatprep.subr.bf16.mxu0 0
        %1917 = vmatpush1.bf16.msra.mxu0 %v1874
        %1918 = vmatprep.subr.bf16.mxu0 0
        %1919 = vmatpush1.bf16.msra.mxu0 %v1875
        %1920 = vmatprep.subr.bf16.mxu0 0
        %1921 = vmatpush1.bf16.msra.mxu0 %v1876
        %1922 = vmatprep.subr.bf16.mxu0 0
        %1923 = vmatpush1.bf16.msra.mxu0 %v1877
        %1924 = vmatprep.subr.bf16.mxu0 0
        %1925 = vmatpush1.bf16.msra.mxu0 %v1878
        %1926 = vmatprep.subr.bf16.mxu0 0
        %1927 = vmatpush1.bf16.msra.mxu0 %v1879
        %1928 = vmatprep.mubr.bf16.mxu0 %v1245
        %1929 = vmatmul.mubr.bf16.gmra.mrb[0].mxu0 %v1244
        %v1930 = vpop.f32.mrb[0].mxu0
        %v1931 = vadd.f32 0.0, %v1930
        %v1932 = vpop.f32.mrb[0].mxu0
        %v1933 = vpop.f32.mrb[0].mxu0
        %v1934 = vadd.f32 0.0, %v1933
        %v1935 = vpop.f32.mrb[0].mxu0
        %1936 = vdwg.mxu0
        %1937 = vmatprep.subr.bf16.mxu0 0
        %1938 = vmatpush1.bf16.msra.mxu0 %v1864
        %1939 = vmatprep.subr.bf16.mxu0 0
        %1940 = vmatpush1.bf16.msra.mxu0 %v1865
        %1941 = vmatprep.subr.bf16.mxu0 0
        %1942 = vmatpush1.bf16.msra.mxu0 %v1866
        %1943 = vmatprep.subr.bf16.mxu0 0
        %1944 = vmatpush1.bf16.msra.mxu0 %v1867
        %1945 = vmatprep.subr.bf16.mxu0 0
        %1946 = vmatpush1.bf16.msra.mxu0 %v1868
        %1947 = vmatprep.subr.bf16.mxu0 0
        %1948 = vmatpush1.bf16.msra.mxu0 %v1869
        %1949 = vmatprep.subr.bf16.mxu0 0
        %1950 = vmatpush1.bf16.msra.mxu0 %v1870
        %1951 = vmatprep.subr.bf16.mxu0 0
        %1952 = vmatpush1.bf16.msra.mxu0 %v1871
        %1953 = vmatprep.subr.bf16.mxu0 0
        %1954 = vmatpush1.bf16.msra.mxu0 %v1872
        %1955 = vmatprep.subr.bf16.mxu0 0
        %1956 = vmatpush1.bf16.msra.mxu0 %v1873
        %1957 = vmatprep.subr.bf16.mxu0 0
        %1958 = vmatpush1.bf16.msra.mxu0 %v1874
        %1959 = vmatprep.subr.bf16.mxu0 0
        %1960 = vmatpush1.bf16.msra.mxu0 %v1875
        %1961 = vmatprep.subr.bf16.mxu0 0
        %1962 = vmatpush1.bf16.msra.mxu0 %v1876
        %1963 = vmatprep.subr.bf16.mxu0 0
        %1964 = vmatpush1.bf16.msra.mxu0 %v1877
        %1965 = vmatprep.subr.bf16.mxu0 0
        %1966 = vmatpush1.bf16.msra.mxu0 %v1878
        %1967 = vmatprep.subr.bf16.mxu0 0
        %1968 = vmatpush1.bf16.msra.mxu0 %v1879
        %1969 = vmatprep.mubr.bf16.mxu0 %v1235
        %1970 = vmatmul.mubr.bf16.gmra.mrb[0].mxu0 %v1234
        %v1971 = vpop.f32.mrb[0].mxu0
        %v1972 = vadd.f32 %v1931, %v1971
        %v1973 = vpop.f32.mrb[0].mxu0
        %v1974 = vpop.f32.mrb[0].mxu0
        %v1975 = vadd.f32 %v1934, %v1974
        %v1976 = vpop.f32.mrb[0].mxu0
        %1977 = vdwg.mxu0
        %1978 = vmatprep.subr.bf16.mxu0 0
        %1979 = vmatpush1.bf16.msra.mxu0 %v1864
        %1980 = vmatprep.subr.bf16.mxu0 0
        %1981 = vmatpush1.bf16.msra.mxu0 %v1865
        %1982 = vmatprep.subr.bf16.mxu0 0
        %1983 = vmatpush1.bf16.msra.mxu0 %v1866
        %1984 = vmatprep.subr.bf16.mxu0 0
        %1985 = vmatpush1.bf16.msra.mxu0 %v1867
        %1986 = vmatprep.subr.bf16.mxu0 0
        %1987 = vmatpush1.bf16.msra.mxu0 %v1868
        %1988 = vmatprep.subr.bf16.mxu0 0
        %1989 = vmatpush1.bf16.msra.mxu0 %v1869
        %1990 = vmatprep.subr.bf16.mxu0 0
        %1991 = vmatpush1.bf16.msra.mxu0 %v1870
        %1992 = vmatprep.subr.bf16.mxu0 0
        %1993 = vmatpush1.bf16.msra.mxu0 %v1871
        %1994 = vmatprep.subr.bf16.mxu0 0
        %1995 = vmatpush1.bf16.msra.mxu0 %v1872
        %1996 = vmatprep.subr.bf16.mxu0 0
        %1997 = vmatpush1.bf16.msra.mxu0 %v1873
        %1998 = vmatprep.subr.bf16.mxu0 0
        %1999 = vmatpush1.bf16.msra.mxu0 %v1874
        %2000 = vmatprep.subr.bf16.mxu0 0
        %2001 = vmatpush1.bf16.msra.mxu0 %v1875
        %2002 = vmatprep.subr.bf16.mxu0 0
        %2003 = vmatpush1.bf16.msra.mxu0 %v1876
        %2004 = vmatprep.subr.bf16.mxu0 0
        %2005 = vmatpush1.bf16.msra.mxu0 %v1877
        %2006 = vmatprep.subr.bf16.mxu0 0
        %2007 = vmatpush1.bf16.msra.mxu0 %v1878
        %2008 = vmatprep.subr.bf16.mxu0 0
        %2009 = vmatpush1.bf16.msra.mxu0 %v1879
        %2010 = vmatprep.mubr.bf16.mxu0 %v1255
        %2011 = vmatmul.mubr.bf16.gmra.mrb[0].mxu0 %v1254
        %v2012 = vpop.f32.mrb[0].mxu0
        %v2013 = vadd.f32 0.0, %v2012
        %v2014 = vpop.f32.mrb[0].mxu0
        %v2015 = vpop.f32.mrb[0].mxu0
        %v2016 = vadd.f32 0.0, %v2015
        %v2017 = vpop.f32.mrb[0].mxu0
        %2018 = vdwg.mxu0
        %v2019 = vadd.f32 %v1972, %v2013
        %v2020 = vadd.f32 %v1975, %v2016
        %s2021 = scalar_lea.vmem %s163, 96 [#allocation2]
        %2022 = vst.msk [vmem:[%s2021] sm:$0xff] %vm456, %v2019
        %2023 = vst.msk [vmem:[%s2021 + $0x8] sm:$0xff] %vm456, %v2020
        %v2024 = vld [vmem:[%s973] sm:$0xf]
        %v2025 = vld [vmem:[%s973 + $0x4] sm:$0xf]
        %v2026 = vld [vmem:[%s973 + $0x8] sm:$0xf]
        %v2027 = vld [vmem:[%s973 + $0xc] sm:$0xf]
        %v2028 = vld [vmem:[%s973 + $0x10] sm:$0xf]
        %v2029 = vld [vmem:[%s973 + $0x14] sm:$0xf]
        %v2030 = vld [vmem:[%s973 + $0x18] sm:$0xf]
        %v2031 = vld [vmem:[%s973 + $0x1c] sm:$0xf]
        %v2032 = vld [vmem:[%s973 + $0x20] sm:$0xf]
        %v2033 = vld [vmem:[%s973 + $0x24] sm:$0xf]
        %v2034 = vld [vmem:[%s973 + $0x28] sm:$0xf]
        %v2035 = vld [vmem:[%s973 + $0x2c] sm:$0xf]
        %v2036 = vld [vmem:[%s973 + $0x30] sm:$0xf]
        %v2037 = vld [vmem:[%s973 + $0x34] sm:$0xf]
        %v2038 = vld [vmem:[%s973 + $0x38] sm:$0xf]
        %v2039 = vld [vmem:[%s973 + $0x3c] sm:$0xf]
        %v2040 = vld [vmem:[%s973 + $0x40] sm:$0xf]
        %v2041 = vld [vmem:[%s973 + $0x44] sm:$0xf]
        %v2042 = vld [vmem:[%s973 + $0x48] sm:$0xf]
        %v2043 = vld [vmem:[%s973 + $0x4c] sm:$0xf]
        %v2044 = vld [vmem:[%s973 + $0x50] sm:$0xf]
        %v2045 = vld [vmem:[%s973 + $0x54] sm:$0xf]
        %v2046 = vld [vmem:[%s973 + $0x58] sm:$0xf]
        %v2047 = vld [vmem:[%s973 + $0x5c] sm:$0xf]
        %v2048 = vld [vmem:[%s973 + $0x60] sm:$0xf]
        %v2049 = vld [vmem:[%s973 + $0x64] sm:$0xf]
        %v2050 = vld [vmem:[%s973 + $0x68] sm:$0xf]
        %v2051 = vld [vmem:[%s973 + $0x6c] sm:$0xf]
        %v2052 = vld [vmem:[%s973 + $0x70] sm:$0xf]
        %v2053 = vld [vmem:[%s973 + $0x74] sm:$0xf]
        %v2054 = vld [vmem:[%s973 + $0x78] sm:$0xf]
        %v2055 = vld [vmem:[%s973 + $0x7c] sm:$0xf]
        %v2088 = vunpack.c.l.b16 %v2024
        %v2089 = vunpack.c.l.b16 %v2025
        %v2090 = vunpack.c.l.b16 %v2026
        %v2091 = vunpack.c.l.b16 %v2027
        %v2092 = vunpack.c.l.b16 %v2028
        %v2093 = vunpack.c.l.b16 %v2029
        %v2094 = vunpack.c.l.b16 %v2030
        %v2095 = vunpack.c.l.b16 %v2031
        %v2096 = vunpack.c.l.b16 %v2032
        %v2097 = vunpack.c.l.b16 %v2033
        %v2098 = vunpack.c.l.b16 %v2034
        %v2099 = vunpack.c.l.b16 %v2035
        %v2100 = vunpack.c.l.b16 %v2036
        %v2101 = vunpack.c.l.b16 %v2037
        %v2102 = vunpack.c.l.b16 %v2038
        %v2103 = vunpack.c.l.b16 %v2039
        %v2104 = vunpack.c.l.b16 %v2040
        %v2105 = vunpack.c.l.b16 %v2041
        %v2106 = vunpack.c.l.b16 %v2042
        %v2107 = vunpack.c.l.b16 %v2043
        %v2108 = vunpack.c.l.b16 %v2044
        %v2109 = vunpack.c.l.b16 %v2045
        %v2110 = vunpack.c.l.b16 %v2046
        %v2111 = vunpack.c.l.b16 %v2047
        %v2112 = vunpack.c.l.b16 %v2048
        %v2113 = vunpack.c.l.b16 %v2049
        %v2114 = vunpack.c.l.b16 %v2050
        %v2115 = vunpack.c.l.b16 %v2051
        %v2116 = vunpack.c.l.b16 %v2052
        %v2117 = vunpack.c.l.b16 %v2053
        %v2118 = vunpack.c.l.b16 %v2054
        %v2119 = vunpack.c.l.b16 %v2055
        %v2120 = vpack.c.b16 %v2089, %v2088
        %v2121 = vpack.c.b16 %v2091, %v2090
        %v2122 = vpack.c.b16 %v2093, %v2092
        %v2123 = vpack.c.b16 %v2095, %v2094
        %v2124 = vpack.c.b16 %v2097, %v2096
        %v2125 = vpack.c.b16 %v2099, %v2098
        %v2126 = vpack.c.b16 %v2101, %v2100
        %v2127 = vpack.c.b16 %v2103, %v2102
        %v2128 = vpack.c.b16 %v2105, %v2104
        %v2129 = vpack.c.b16 %v2107, %v2106
        %v2130 = vpack.c.b16 %v2109, %v2108
        %v2131 = vpack.c.b16 %v2111, %v2110
        %v2132 = vpack.c.b16 %v2113, %v2112
        %v2133 = vpack.c.b16 %v2115, %v2114
        %v2134 = vpack.c.b16 %v2117, %v2116
        %v2135 = vpack.c.b16 %v2119, %v2118
        %2152 = vmatprep.subr.bf16.mxu0 0
        %2153 = vmatpush1.bf16.msra.mxu0 %v2120
        %2154 = vmatprep.subr.bf16.mxu0 0
        %2155 = vmatpush1.bf16.msra.mxu0 %v2121
        %2156 = vmatprep.subr.bf16.mxu0 0
        %2157 = vmatpush1.bf16.msra.mxu0 %v2122
        %2158 = vmatprep.subr.bf16.mxu0 0
        %2159 = vmatpush1.bf16.msra.mxu0 %v2123
        %2160 = vmatprep.subr.bf16.mxu0 0
        %2161 = vmatpush1.bf16.msra.mxu0 %v2124
        %2162 = vmatprep.subr.bf16.mxu0 0
        %2163 = vmatpush1.bf16.msra.mxu0 %v2125
        %2164 = vmatprep.subr.bf16.mxu0 0
        %2165 = vmatpush1.bf16.msra.mxu0 %v2126
        %2166 = vmatprep.subr.bf16.mxu0 0
        %2167 = vmatpush1.bf16.msra.mxu0 %v2127
        %2168 = vmatprep.subr.bf16.mxu0 0
        %2169 = vmatpush1.bf16.msra.mxu0 %v2128
        %2170 = vmatprep.subr.bf16.mxu0 0
        %2171 = vmatpush1.bf16.msra.mxu0 %v2129
        %2172 = vmatprep.subr.bf16.mxu0 0
        %2173 = vmatpush1.bf16.msra.mxu0 %v2130
        %2174 = vmatprep.subr.bf16.mxu0 0
        %2175 = vmatpush1.bf16.msra.mxu0 %v2131
        %2176 = vmatprep.subr.bf16.mxu0 0
        %2177 = vmatpush1.bf16.msra.mxu0 %v2132
        %2178 = vmatprep.subr.bf16.mxu0 0
        %2179 = vmatpush1.bf16.msra.mxu0 %v2133
        %2180 = vmatprep.subr.bf16.mxu0 0
        %2181 = vmatpush1.bf16.msra.mxu0 %v2134
        %2182 = vmatprep.subr.bf16.mxu0 0
        %2183 = vmatpush1.bf16.msra.mxu0 %v2135
        %2184 = vmatprep.mubr.bf16.mxu0 %v1245
        %2185 = vmatmul.mubr.bf16.gmra.mrb[0].mxu0 %v1244
        %v2186 = vpop.f32.mrb[0].mxu0
        %v2187 = vadd.f32 0.0, %v2186
        %v2188 = vpop.f32.mrb[0].mxu0
        %v2189 = vpop.f32.mrb[0].mxu0
        %v2190 = vadd.f32 0.0, %v2189
        %v2191 = vpop.f32.mrb[0].mxu0
        %2192 = vdwg.mxu0
        %2193 = vmatprep.subr.bf16.mxu0 0
        %2194 = vmatpush1.bf16.msra.mxu0 %v2120
        %2195 = vmatprep.subr.bf16.mxu0 0
        %2196 = vmatpush1.bf16.msra.mxu0 %v2121
        %2197 = vmatprep.subr.bf16.mxu0 0
        %2198 = vmatpush1.bf16.msra.mxu0 %v2122
        %2199 = vmatprep.subr.bf16.mxu0 0
        %2200 = vmatpush1.bf16.msra.mxu0 %v2123
        %2201 = vmatprep.subr.bf16.mxu0 0
        %2202 = vmatpush1.bf16.msra.mxu0 %v2124
        %2203 = vmatprep.subr.bf16.mxu0 0
        %2204 = vmatpush1.bf16.msra.mxu0 %v2125
        %2205 = vmatprep.subr.bf16.mxu0 0
        %2206 = vmatpush1.bf16.msra.mxu0 %v2126
        %2207 = vmatprep.subr.bf16.mxu0 0
        %2208 = vmatpush1.bf16.msra.mxu0 %v2127
        %2209 = vmatprep.subr.bf16.mxu0 0
        %2210 = vmatpush1.bf16.msra.mxu0 %v2128
        %2211 = vmatprep.subr.bf16.mxu0 0
        %2212 = vmatpush1.bf16.msra.mxu0 %v2129
        %2213 = vmatprep.subr.bf16.mxu0 0
        %2214 = vmatpush1.bf16.msra.mxu0 %v2130
        %2215 = vmatprep.subr.bf16.mxu0 0
        %2216 = vmatpush1.bf16.msra.mxu0 %v2131
        %2217 = vmatprep.subr.bf16.mxu0 0
        %2218 = vmatpush1.bf16.msra.mxu0 %v2132
        %2219 = vmatprep.subr.bf16.mxu0 0
        %2220 = vmatpush1.bf16.msra.mxu0 %v2133
        %2221 = vmatprep.subr.bf16.mxu0 0
        %2222 = vmatpush1.bf16.msra.mxu0 %v2134
        %2223 = vmatprep.subr.bf16.mxu0 0
        %2224 = vmatpush1.bf16.msra.mxu0 %v2135
        %2225 = vmatprep.mubr.bf16.mxu0 %v1235
        %2226 = vmatmul.mubr.bf16.gmra.mrb[0].mxu0 %v1234
        %v2227 = vpop.f32.mrb[0].mxu0
        %v2228 = vadd.f32 %v2187, %v2227
        %v2229 = vpop.f32.mrb[0].mxu0
        %v2230 = vpop.f32.mrb[0].mxu0
        %v2231 = vadd.f32 %v2190, %v2230
        %v2232 = vpop.f32.mrb[0].mxu0
        %2233 = vdwg.mxu0
        %2234 = vmatprep.subr.bf16.mxu0 0
        %2235 = vmatpush1.bf16.msra.mxu0 %v2120
        %2236 = vmatprep.subr.bf16.mxu0 0
        %2237 = vmatpush1.bf16.msra.mxu0 %v2121
        %2238 = vmatprep.subr.bf16.mxu0 0
        %2239 = vmatpush1.bf16.msra.mxu0 %v2122
        %2240 = vmatprep.subr.bf16.mxu0 0
        %2241 = vmatpush1.bf16.msra.mxu0 %v2123
        %2242 = vmatprep.subr.bf16.mxu0 0
        %2243 = vmatpush1.bf16.msra.mxu0 %v2124
        %2244 = vmatprep.subr.bf16.mxu0 0
        %2245 = vmatpush1.bf16.msra.mxu0 %v2125
        %2246 = vmatprep.subr.bf16.mxu0 0
        %2247 = vmatpush1.bf16.msra.mxu0 %v2126
        %2248 = vmatprep.subr.bf16.mxu0 0
        %2249 = vmatpush1.bf16.msra.mxu0 %v2127
        %2250 = vmatprep.subr.bf16.mxu0 0
        %2251 = vmatpush1.bf16.msra.mxu0 %v2128
        %2252 = vmatprep.subr.bf16.mxu0 0
        %2253 = vmatpush1.bf16.msra.mxu0 %v2129
        %2254 = vmatprep.subr.bf16.mxu0 0
        %2255 = vmatpush1.bf16.msra.mxu0 %v2130
        %2256 = vmatprep.subr.bf16.mxu0 0
        %2257 = vmatpush1.bf16.msra.mxu0 %v2131
        %2258 = vmatprep.subr.bf16.mxu0 0
        %2259 = vmatpush1.bf16.msra.mxu0 %v2132
        %2260 = vmatprep.subr.bf16.mxu0 0
        %2261 = vmatpush1.bf16.msra.mxu0 %v2133
        %2262 = vmatprep.subr.bf16.mxu0 0
        %2263 = vmatpush1.bf16.msra.mxu0 %v2134
        %2264 = vmatprep.subr.bf16.mxu0 0
        %2265 = vmatpush1.bf16.msra.mxu0 %v2135
        %2266 = vmatprep.mubr.bf16.mxu0 %v1255
        %2267 = vmatmul.mubr.bf16.gmra.mrb[0].mxu0 %v1254
        %v2268 = vpop.f32.mrb[0].mxu0
        %v2269 = vadd.f32 0.0, %v2268
        %v2270 = vpop.f32.mrb[0].mxu0
        %v2271 = vpop.f32.mrb[0].mxu0
        %v2272 = vadd.f32 0.0, %v2271
        %v2273 = vpop.f32.mrb[0].mxu0
        %2274 = vdwg.mxu0
        %v2275 = vadd.f32 %v2228, %v2269
        %v2276 = vadd.f32 %v2231, %v2272
        %s2277 = scalar_lea.vmem %s163, 112 [#allocation2]
        %2278 = vst.msk [vmem:[%s2277] sm:$0xff] %vm456, %v2275
        %2279 = vst.msk [vmem:[%s2277 + $0x8] sm:$0xff] %vm456, %v2276
        %s2280 = sand.u32 %s87, 1
        %s2281 = scalar_lea.sflag [#allocation3], %s2280
        %s2282 = sand.u32 %s87, 1
        %s2283 = smul.addr %s2282, 128
        %s2284 = scalar_lea.vmem [#allocation2], %s2283
        // Predicated region
        $region29: #{tpu_custom_call.1} parent=27 // pred_check
          %p2285 = pneg %p97
        $region30: #{tpu_custom_call.1} parent=27 // pred_check_branch
          %2287 = sbr.rel (%p2285) target = $region32
        $region31: #{tpu_custom_call.1} parent=27 // pred_region
          #allocation5 [shape = 'u32[6]{0}', space=smem, size = 0x18, scoped, tag = 'DMA stride descriptor']
          %s2288 = smul.u32 2, %s21
          %s2290 = ssub.s32 2048, 2048
          %2291 = vsyncadd %s2281, %s2290
          %s2292 = smul.addr %s20, 32
          %s2293 = sadd.s32 %s2288, %s2292
          %s2294 = smul.addr %s2293, 128
          %s2295 = scalar_lea.hbm %s2, %s2294
          %s2297 = sshll.u32 1, 14
          %s2298 = sxor.u32 4294967295, %s2297
          %s2301 = sshll.u32 7, 18
          %s2302 = sxor.u32 4294967295, %s2301
          %s2303 = sand.u32 0, %s2302
          %s2305 = sor.u32 %s2303, 0
          %s2307 = sshll.u32 3, 24
          %s2308 = sxor.u32 4294967295, %s2307
          %s2309 = sand.u32 %s2305, %s2308
          %s2311 = sor.u32 %s2309, 0
          %s2312 = sshll.u32 %s2284, 4
          %s2313 = int_to_ptr.vmem [resolvable:$true] %s2312
          %2319 = sst [smem:[#allocation5]] 256
          %s2320 = scalar_lea.smem [#allocation5], 1
          %2321 = sst [smem:[%s2320]] 512
          %s2322 = scalar_lea.smem [#allocation5], 2
          %2323 = sst [smem:[%s2322]] 2
          %s2324 = scalar_lea.smem [#allocation5], 3
          %2325 = sst [smem:[%s2324]] 128
          %s2326 = scalar_lea.smem [#allocation5], 4
          %2327 = sst [smem:[%s2326]] 128
          %s2328 = scalar_lea.smem [#allocation5], 5
          %2329 = sst [smem:[%s2328]] 8
          %2331 = dma.general %s2313, 2048, %s2295, %s2281, [#allocation4], [#allocation5], %s2311, 0
        $region32: #{tpu_custom_call.1} parent=27 // pred_fallthru
          _
      $region28: #{tpu_custom_call.1} parent=5 // pred_fallthru
        _
      %p2332 = scmp.le.s32.totalorder 2, %s11
      // Predicated region
      $region33: #{tpu_custom_call.1} parent=5 // pred_check
        %p2333 = pneg %p2332
      $region34: #{tpu_custom_call.1} parent=5 // pred_check_branch
        %2335 = sbr.rel (%p2333) target = $region36
      $region35: #{tpu_custom_call.1} parent=5 // pred_region
        %s2336 = ssub.s32 %s11, 2
        // Predicated region
        $region37: #{tpu_custom_call.1} parent=35 // pred_check
          %p2337 = pneg %p103
        $region38: #{tpu_custom_call.1} parent=35 // pred_check_branch
          %2339 = sbr.rel (%p2337) target = $region40
        $region39: #{tpu_custom_call.1} parent=35 // pred_region
          %s2340 = sand.u32 %s88, 1
          %s2341 = scalar_lea.sflag [#allocation3], %s2340
          %s2342 = sand.u32 %s88, 1
          %s2343 = smul.addr %s2342, 128
          %s2344 = scalar_lea.vmem [#allocation2], %s2343
          %2345 = dma.done %s2341, 2048
        $region40: #{tpu_custom_call.1} parent=35 // pred_fallthru
          _
      $region36: #{tpu_custom_call.1} parent=5 // pred_fallthru
        _
    $region6: #{tpu_custom_call.1} parent=1 // loop_footer
      %s15 = sadd.s32 1, %s11
    $region7: #{tpu_custom_call.1} parent=1 // loop_footer_branch
      %10 = sbr.rel target = $region3
    $region8: #{tpu_custom_call.1} parent=1 // loop_exit
      _
    %2346 = vsyncpa [#allocation3], 1
    %s2347 = scalar_lea.sflag [#allocation3], 1
    %2348 = vsyncpa %s2347, 1

</llo_original>
